<compile_context>
chip_gen: v6e
topology: v6e:2x2x1
jax: 0.10.0
libtpu: 0.0.40
codegen_flags: <defaults>
</compile_context>

<pallas_src>
import functools

import jax
import jax.numpy as jnp
from jax import lax
from jax.experimental import pallas as pl
from jax.experimental.pallas import tpu as pltpu


def _recip(d):
    """1/d via EUP approx reciprocal + one Newton-Raphson refinement."""
    r = pl.reciprocal(d, approx=True)
    return r * (2.0 - d * r)


def _make_kernel(H, W, rows_per_tile):
    """Row-streamed residual kernel.

    Block layouts (batch NB on the lane axis):
      u_ref, v_ref, m_ref : (Hp, Wp, NB)   padded planes (Hp=H+2, Wp=W+2)
      o_ref               : (1, 1, NB)     partial sum-of-squares for this
                                           (row-tile, batch-tile) grid point
    """

    def kernel(u_ref, v_ref, m_ref, o_ref):
        row_start = pl.program_id(1) * rows_per_tile

        def wrow(ref, r, c0):
            # (W, NB) window of padded row r starting at padded column c0.
            return ref[r, pl.ds(c0, W), :]

        # ---- prime the vertical-branch carry: d1 at k = row_start ----------
        ua = wrow(u_ref, row_start, 1)
        ub = wrow(u_ref, row_start + 1, 1)
        va = wrow(v_ref, row_start, 1)
        vb = wrow(v_ref, row_start + 1, 1)
        ma = wrow(m_ref, row_start, 1)
        d1_prev0 = ma * ((vb - va) * (ua + ub)) * _recip(va + vb)
        acc0 = jnp.zeros_like(d1_prev0)

        def body(step, carry):
            d1_prev, acc = carry
            i = row_start + step               # output row index, 0..H-1

            # Row loads (windows of width W; start 0/1/2 = cols j-1 / j / j+1).
            uc0 = wrow(u_ref, i, 1)
            uc1 = wrow(u_ref, i + 1, 1)
            uc2 = wrow(u_ref, i + 2, 1)
            ul1 = wrow(u_ref, i + 1, 0)
            ur1 = wrow(u_ref, i + 1, 2)
            vc1 = wrow(v_ref, i + 1, 1)
            vc2 = wrow(v_ref, i + 2, 1)
            vl1 = wrow(v_ref, i + 1, 0)
            vr1 = wrow(v_ref, i + 1, 2)
            mc1 = wrow(m_ref, i + 1, 1)
            ml1 = wrow(m_ref, i + 1, 0)

            # Laplacian (reuse s12 = u[i+1]+u[i+2] shared with d1_next):
            #   lap = u[i,j] + u[i+2,j] - 4 u[i+1,j] + u[i+1,j-1] + u[i+1,j+1]
            s12 = uc1 + uc2
            lap = uc0 + s12 - 5.0 * uc1 + ul1 + ur1

            # Vertical branch (the 0.5 factors of f2 cancel against f1/f2):
            #   d1_k = m_k (v_{k+1}-v_k)(u_k+u_{k+1}) / (v_k+v_{k+1})
            d1_next = mc1 * ((vc2 - vc1) * s12) * _recip(vc1 + vc2)
            dx = d1_next - d1_prev

            # Horizontal branch, evaluated at columns j and j-1:
            d2_c = mc1 * ((vr1 - vc1) * (uc1 + ur1)) * _recip(vc1 + vr1)
            d2_l = ml1 * ((vc1 - vl1) * (ul1 + uc1)) * _recip(vl1 + vc1)
            dy = d2_c - d2_l

            ss = lap - dx - dy
            return d1_next, acc + ss * ss

        unroll = rows_per_tile <= 16
        _, acc = lax.fori_loop(0, rows_per_tile, body, (d1_prev0, acc0),
                               unroll=unroll)
        # Sublane (W) reduction; sqrt + batch mean happen in the wrapper.
        o_ref[...] = jnp.sum(acc, axis=0, keepdims=True).reshape(o_ref.shape)

    return kernel


def residual_loss_pallas(x, f, mask, offset):
    """x, f: (N, 1, H, W);  mask: (N, 1, H+2, W+2).  Returns a scalar (f32)."""
    N, C, H, W = x.shape
    assert C == 1, "ResidualLoss conv kernels are single-channel"
    Hp, Wp = H + 2, W + 2
    assert mask.shape == (N, C, Hp, Wp)

    # ---- batch tiling (batch lives on the 128-wide lane axis) --------------
    N8 = ((N + 7) // 8) * 8
    if N8 <= 128:
        NB = N8                       # block lane dim == full dim (legal)
        N_pad = N8
    else:
        NB = 128                      # lane-tiled: must be a multiple of 128
        N_pad = ((N + 127) // 128) * 128
    G = N_pad // NB

    # ---- row tiling: guarantee >= 2 grid points so both v7x TCs get work ---
    RT = 2 if (G == 1 and H >= 4 and H % 2 == 0) else 1
    rows_per_tile = H // RT

    # ---- host-side prep: offset + symmetric pad + batch-on-lanes layout ----
    def prep(a, pad_val):
        a = jnp.moveaxis(a[:, 0].astype(jnp.float32), 0, -1)    # (Hp, Wp, N)
        if N_pad != N:
            a = jnp.pad(a, ((0, 0), (0, 0), (0, N_pad - N)),
                        constant_values=pad_val)
        return a

    u = prep(jnp.pad(x + offset, ((0, 0), (0, 0), (1, 1), (1, 1)),
                     mode="symmetric"), 1.0)     # pad batch with 1 -> no div/0
    v = prep(jnp.pad(f + offset, ((0, 0), (0, 0), (1, 1), (1, 1)),
                     mode="symmetric"), 1.0)
    m = prep(mask, 0.0)

    # ---- generation-aware VMEM budget ---------------------------------------
    try:
        vmem_cap = int(pltpu.get_tpu_info().vmem_capacity_bytes)
    except Exception:
        vmem_cap = 64 * 1024 * 1024   # v7x (smallest generation) as fallback
    per_step_bytes = 2 * 3 * Hp * Wp * NB * 4 + 2 * RT * NB * 4
    vmem_limit = min(int(0.9 * vmem_cap),
                     max(per_step_bytes + (2 << 20), 16 << 20))

    img_spec = pl.BlockSpec((Hp, Wp, NB), lambda b, rt: (0, 0, b))
    out_spec = pl.BlockSpec((1, 1, NB), lambda b, rt: (rt, 0, b))

    partial = pl.pallas_call(
        _make_kernel(H, W, rows_per_tile),
        out_shape=jax.ShapeDtypeStruct((RT, 1, N_pad), jnp.float32),
        grid_spec=pltpu.PrefetchScalarGridSpec(
            num_scalar_prefetch=0,
            grid=(G, RT),
            in_specs=[img_spec, img_spec, img_spec],
            out_specs=out_spec,
        ),
        compiler_params=pltpu.CompilerParams(
            dimension_semantics=("parallel", "parallel"),
            vmem_limit_bytes=vmem_limit),
    )(u, v, m)

    # torch.mean(torch.norm(ss, dim=(2,3))) over an (N, 1) tensor.
    sumsq = jnp.sum(partial, axis=(0, 1))[:N]          # (N,)
    return jnp.mean(jnp.sqrt(sumsq))


# ---------------- pure-JAX reference (mirrors F.conv2d semantics) -------------
def _conv(x, k, pad):
    return lax.conv_general_dilated(
        x, k, window_strides=(1, 1), padding=pad,
        dimension_numbers=("NCHW", "OIHW", "NCHW"),
        precision=lax.Precision.HIGHEST)


def residual_loss_reference(x, f, mask, offset):
    u = jnp.pad(x + offset, ((0, 0), (0, 0), (1, 1), (1, 1)), mode="symmetric")
    v = jnp.pad(f + offset, ((0, 0), (0, 0), (1, 1), (1, 1)), mode="symmetric")

    lap_k = jnp.array([[[[0., 1., 0.], [1., -4., 1.], [0., 1., 0.]]]], jnp.float32)
    lap_u = _conv(u, lap_k, [(0, 0), (0, 0)])

    f1 = jnp.array([[[[-1.0], [1.0]]]], jnp.float32)
    f2 = jnp.array([[[[0.5], [0.5]]]], jnp.float32)
    same_h = [(0, 1), (0, 0)]                      # PyTorch 'same' for kh=2
    d1 = _conv(v, f1, same_h) / _conv(v, f2, same_h) * _conv(u, f2, same_h)
    d1 = mask * d1
    dx = d1[:, :, 1:-1, 1:-1] - d1[:, :, 0:-2, 1:-1]

    f3 = jnp.array([[[[-1.0, 1.0]]]], jnp.float32)
    f4 = jnp.array([[[[0.5, 0.5]]]], jnp.float32)
    same_w = [(0, 0), (0, 1)]                      # PyTorch 'same' for kw=2
    d2 = _conv(v, f3, same_w) / _conv(v, f4, same_w) * _conv(u, f4, same_w)
    d2 = mask * d2
    dy = d2[:, :, 1:-1, 1:-1] - d2[:, :, 1:-1, 0:-2]

    ss = lap_u - dx - dy
    norms = jnp.sqrt(jnp.sum(ss * ss, axis=(2, 3)))    # (N, 1)
    return jnp.mean(norms)


if __name__ == "__main__":
    key = jax.random.PRNGKey(0)
    N, C, H, W = 2, 1, 16, 16
    offset = 1.0
    k1, k2, k3 = jax.random.split(key, 3)
    x = jax.random.uniform(k1, (N, C, H, W), dtype=jnp.float32)
    f = jax.random.uniform(k2, (N, C, H, W), dtype=jnp.float32)
    # mask lives at the padded resolution (it multiplies 'same'-conv outputs)
    mask = (jax.random.uniform(k3, (N, C, H + 2, W + 2)) > 0.5).astype(jnp.float32)

    out = residual_loss_pallas(x, f, mask, offset)
    out = jax.block_until_ready(out)

    ref = residual_loss_reference(x, f, mask, offset)
    assert abs(float(out) - float(ref)) < 1e-4 * max(1.0, abs(float(ref))), (
        float(out), float(ref))
    print("KERNEL_OK")
</pallas_src>

<mosaic_0001>
module attributes {stable_mosaic.version = 11 : i64} {
  func.func @kernel(%arg0: i32, %arg1: i32, %arg2: memref<18x18x8xf32, #tpu.memory_space<vmem>>, %arg3: memref<18x18x8xf32, #tpu.memory_space<vmem>>, %arg4: memref<18x18x8xf32, #tpu.memory_space<vmem>>, %arg5: memref<1x1x8xf32, #tpu.memory_space<vmem>>) attributes {dimension_semantics = [#tpu.dimension_semantics<parallel>, #tpu.dimension_semantics<parallel>], iteration_bounds = array<i64: 1, 2>, scalar_prefetch = 0 : i64, scratch_operands = 0 : i64, tpu.core_type = #tpu.core_type<tc>, window_params = [{transform_indices = @transform_0, window_bounds = array<i64: 18, 18, 8>}, {transform_indices = @transform_1, window_bounds = array<i64: 18, 18, 8>}, {transform_indices = @transform_2, window_bounds = array<i64: 18, 18, 8>}, {transform_indices = @transform_3, window_bounds = array<i64: 1, 1, 8>}]} {
    %c8_i32 = arith.constant 8 : i32
    %0 = arith.muli %arg1, %c8_i32 : i32
    %1 = arith.index_cast %0 : i32 to index
    %c1 = arith.constant 1 : index
    %c0 = arith.constant 0 : index
    %2 = vector.load %arg2[%1, %c1, %c0] : memref<18x18x8xf32, #tpu.memory_space<vmem>>, vector<1x16x8xf32>
    %3 = vector.shape_cast %2 : vector<1x16x8xf32> to vector<16x8xf32>
    %c1_i32 = arith.constant 1 : i32
    %4 = arith.addi %0, %c1_i32 : i32
    %5 = arith.index_cast %4 : i32 to index
    %c1_0 = arith.constant 1 : index
    %c0_1 = arith.constant 0 : index
    %6 = vector.load %arg2[%5, %c1_0, %c0_1] : memref<18x18x8xf32, #tpu.memory_space<vmem>>, vector<1x16x8xf32>
    %7 = vector.shape_cast %6 : vector<1x16x8xf32> to vector<16x8xf32>
    %8 = arith.index_cast %0 : i32 to index
    %c1_2 = arith.constant 1 : index
    %c0_3 = arith.constant 0 : index
    %9 = vector.load %arg3[%8, %c1_2, %c0_3] : memref<18x18x8xf32, #tpu.memory_space<vmem>>, vector<1x16x8xf32>
    %10 = vector.shape_cast %9 : vector<1x16x8xf32> to vector<16x8xf32>
    %c1_i32_4 = arith.constant 1 : i32
    %11 = arith.addi %0, %c1_i32_4 : i32
    %12 = arith.index_cast %11 : i32 to index
    %c1_5 = arith.constant 1 : index
    %c0_6 = arith.constant 0 : index
    %13 = vector.load %arg3[%12, %c1_5, %c0_6] : memref<18x18x8xf32, #tpu.memory_space<vmem>>, vector<1x16x8xf32>
    %14 = vector.shape_cast %13 : vector<1x16x8xf32> to vector<16x8xf32>
    %15 = arith.index_cast %0 : i32 to index
    %c1_7 = arith.constant 1 : index
    %c0_8 = arith.constant 0 : index
    %16 = vector.load %arg4[%15, %c1_7, %c0_8] : memref<18x18x8xf32, #tpu.memory_space<vmem>>, vector<1x16x8xf32>
    %17 = vector.shape_cast %16 : vector<1x16x8xf32> to vector<16x8xf32>
    %18 = arith.subf %14, %10 : vector<16x8xf32>
    %19 = arith.addf %3, %7 : vector<16x8xf32>
    %20 = arith.mulf %18, %19 : vector<16x8xf32>
    %21 = arith.mulf %17, %20 : vector<16x8xf32>
    %22 = arith.addf %10, %14 : vector<16x8xf32>
    %23 = tpu.reciprocal %22 {approx = true} : vector<16x8xf32> -> vector<16x8xf32>
    %24 = arith.mulf %22, %23 : vector<16x8xf32>
    %cst = arith.constant 2.000000e+00 : f32
    %25 = vector.broadcast %cst : f32 to vector<16x8xf32>
    %26 = arith.subf %25, %24 : vector<16x8xf32>
    %27 = arith.mulf %23, %26 : vector<16x8xf32>
    %28 = arith.mulf %21, %27 : vector<16x8xf32>
    %cst_9 = arith.constant 0.000000e+00 : f32
    %29 = vector.broadcast %cst_9 : f32 to vector<16x8xf32>
    %c0_i32 = arith.constant 0 : i32
    %30 = arith.addi %0, %c0_i32 : i32
    %31 = arith.index_cast %30 : i32 to index
    %c1_10 = arith.constant 1 : index
    %c0_11 = arith.constant 0 : index
    %32 = vector.load %arg2[%31, %c1_10, %c0_11] : memref<18x18x8xf32, #tpu.memory_space<vmem>>, vector<1x16x8xf32>
    %33 = vector.shape_cast %32 : vector<1x16x8xf32> to vector<16x8xf32>
    %c1_i32_12 = arith.constant 1 : i32
    %34 = arith.addi %30, %c1_i32_12 : i32
    %35 = arith.index_cast %34 : i32 to index
    %c1_13 = arith.constant 1 : index
    %c0_14 = arith.constant 0 : index
    %36 = vector.load %arg2[%35, %c1_13, %c0_14] : memref<18x18x8xf32, #tpu.memory_space<vmem>>, vector<1x16x8xf32>
    %37 = vector.shape_cast %36 : vector<1x16x8xf32> to vector<16x8xf32>
    %c2_i32 = arith.constant 2 : i32
    %38 = arith.addi %30, %c2_i32 : i32
    %39 = arith.index_cast %38 : i32 to index
    %c1_15 = arith.constant 1 : index
    %c0_16 = arith.constant 0 : index
    %40 = vector.load %arg2[%39, %c1_15, %c0_16] : memref<18x18x8xf32, #tpu.memory_space<vmem>>, vector<1x16x8xf32>
    %41 = vector.shape_cast %40 : vector<1x16x8xf32> to vector<16x8xf32>
    %c1_i32_17 = arith.constant 1 : i32
    %42 = arith.addi %30, %c1_i32_17 : i32
    %43 = arith.index_cast %42 : i32 to index
    %c0_18 = arith.constant 0 : index
    %c0_19 = arith.constant 0 : index
    %44 = vector.load %arg2[%43, %c0_18, %c0_19] : memref<18x18x8xf32, #tpu.memory_space<vmem>>, vector<1x16x8xf32>
    %45 = vector.shape_cast %44 : vector<1x16x8xf32> to vector<16x8xf32>
    %c1_i32_20 = arith.constant 1 : i32
    %46 = arith.addi %30, %c1_i32_20 : i32
    %47 = arith.index_cast %46 : i32 to index
    %c2 = arith.constant 2 : index
    %c0_21 = arith.constant 0 : index
    %48 = vector.load %arg2[%47, %c2, %c0_21] : memref<18x18x8xf32, #tpu.memory_space<vmem>>, vector<1x16x8xf32>
    %49 = vector.shape_cast %48 : vector<1x16x8xf32> to vector<16x8xf32>
    %c1_i32_22 = arith.constant 1 : i32
    %50 = arith.addi %30, %c1_i32_22 : i32
    %51 = arith.index_cast %50 : i32 to index
    %c1_23 = arith.constant 1 : index
    %c0_24 = arith.constant 0 : index
    %52 = vector.load %arg3[%51, %c1_23, %c0_24] : memref<18x18x8xf32, #tpu.memory_space<vmem>>, vector<1x16x8xf32>
    %53 = vector.shape_cast %52 : vector<1x16x8xf32> to vector<16x8xf32>
    %c2_i32_25 = arith.constant 2 : i32
    %54 = arith.addi %30, %c2_i32_25 : i32
    %55 = arith.index_cast %54 : i32 to index
    %c1_26 = arith.constant 1 : index
    %c0_27 = arith.constant 0 : index
    %56 = vector.load %arg3[%55, %c1_26, %c0_27] : memref<18x18x8xf32, #tpu.memory_space<vmem>>, vector<1x16x8xf32>
    %57 = vector.shape_cast %56 : vector<1x16x8xf32> to vector<16x8xf32>
    %c1_i32_28 = arith.constant 1 : i32
    %58 = arith.addi %30, %c1_i32_28 : i32
    %59 = arith.index_cast %58 : i32 to index
    %c0_29 = arith.constant 0 : index
    %c0_30 = arith.constant 0 : index
    %60 = vector.load %arg3[%59, %c0_29, %c0_30] : memref<18x18x8xf32, #tpu.memory_space<vmem>>, vector<1x16x8xf32>
    %61 = vector.shape_cast %60 : vector<1x16x8xf32> to vector<16x8xf32>
    %c1_i32_31 = arith.constant 1 : i32
    %62 = arith.addi %30, %c1_i32_31 : i32
    %63 = arith.index_cast %62 : i32 to index
    %c2_32 = arith.constant 2 : index
    %c0_33 = arith.constant 0 : index
    %64 = vector.load %arg3[%63, %c2_32, %c0_33] : memref<18x18x8xf32, #tpu.memory_space<vmem>>, vector<1x16x8xf32>
    %65 = vector.shape_cast %64 : vector<1x16x8xf32> to vector<16x8xf32>
    %c1_i32_34 = arith.constant 1 : i32
    %66 = arith.addi %30, %c1_i32_34 : i32
    %67 = arith.index_cast %66 : i32 to index
    %c1_35 = arith.constant 1 : index
    %c0_36 = arith.constant 0 : index
    %68 = vector.load %arg4[%67, %c1_35, %c0_36] : memref<18x18x8xf32, #tpu.memory_space<vmem>>, vector<1x16x8xf32>
    %69 = vector.shape_cast %68 : vector<1x16x8xf32> to vector<16x8xf32>
    %c1_i32_37 = arith.constant 1 : i32
    %70 = arith.addi %30, %c1_i32_37 : i32
    %71 = arith.index_cast %70 : i32 to index
    %c0_38 = arith.constant 0 : index
    %c0_39 = arith.constant 0 : index
    %72 = vector.load %arg4[%71, %c0_38, %c0_39] : memref<18x18x8xf32, #tpu.memory_space<vmem>>, vector<1x16x8xf32>
    %73 = vector.shape_cast %72 : vector<1x16x8xf32> to vector<16x8xf32>
    %74 = arith.addf %37, %41 : vector<16x8xf32>
    %75 = arith.addf %33, %74 : vector<16x8xf32>
    %cst_40 = arith.constant 5.000000e+00 : f32
    %76 = vector.broadcast %cst_40 : f32 to vector<16x8xf32>
    %77 = arith.mulf %76, %37 : vector<16x8xf32>
    %78 = arith.subf %75, %77 : vector<16x8xf32>
    %79 = arith.addf %78, %45 : vector<16x8xf32>
    %80 = arith.addf %79, %49 : vector<16x8xf32>
    %81 = arith.subf %57, %53 : vector<16x8xf32>
    %82 = arith.mulf %81, %74 : vector<16x8xf32>
    %83 = arith.mulf %69, %82 : vector<16x8xf32>
    %84 = arith.addf %53, %57 : vector<16x8xf32>
    %85 = tpu.reciprocal %84 {approx = true} : vector<16x8xf32> -> vector<16x8xf32>
    %86 = arith.mulf %84, %85 : vector<16x8xf32>
    %cst_41 = arith.constant 2.000000e+00 : f32
    %87 = vector.broadcast %cst_41 : f32 to vector<16x8xf32>
    %88 = arith.subf %87, %86 : vector<16x8xf32>
    %89 = arith.mulf %85, %88 : vector<16x8xf32>
    %90 = arith.mulf %83, %89 : vector<16x8xf32>
    %91 = arith.subf %90, %28 : vector<16x8xf32>
    %92 = arith.subf %65, %53 : vector<16x8xf32>
    %93 = arith.addf %37, %49 : vector<16x8xf32>
    %94 = arith.mulf %92, %93 : vector<16x8xf32>
    %95 = arith.mulf %69, %94 : vector<16x8xf32>
    %96 = arith.addf %53, %65 : vector<16x8xf32>
    %97 = tpu.reciprocal %96 {approx = true} : vector<16x8xf32> -> vector<16x8xf32>
    %98 = arith.mulf %96, %97 : vector<16x8xf32>
    %cst_42 = arith.constant 2.000000e+00 : f32
    %99 = vector.broadcast %cst_42 : f32 to vector<16x8xf32>
    %100 = arith.subf %99, %98 : vector<16x8xf32>
    %101 = arith.mulf %97, %100 : vector<16x8xf32>
    %102 = arith.mulf %95, %101 : vector<16x8xf32>
    %103 = arith.subf %53, %61 : vector<16x8xf32>
    %104 = arith.addf %45, %37 : vector<16x8xf32>
    %105 = arith.mulf %103, %104 : vector<16x8xf32>
    %106 = arith.mulf %73, %105 : vector<16x8xf32>
    %107 = arith.addf %61, %53 : vector<16x8xf32>
    %108 = tpu.reciprocal %107 {approx = true} : vector<16x8xf32> -> vector<16x8xf32>
    %109 = arith.mulf %107, %108 : vector<16x8xf32>
    %cst_43 = arith.constant 2.000000e+00 : f32
    %110 = vector.broadcast %cst_43 : f32 to vector<16x8xf32>
    %111 = arith.subf %110, %109 : vector<16x8xf32>
    %112 = arith.mulf %108, %111 : vector<16x8xf32>
    %113 = arith.mulf %106, %112 : vector<16x8xf32>
    %114 = arith.subf %102, %113 : vector<16x8xf32>
    %115 = arith.subf %80, %91 : vector<16x8xf32>
    %116 = arith.subf %115, %114 : vector<16x8xf32>
    %117 = arith.mulf %116, %116 : vector<16x8xf32>
    %118 = arith.addf %29, %117 : vector<16x8xf32>
    %c1_i32_44 = arith.constant 1 : i32
    %119 = arith.addi %0, %c1_i32_44 : i32
    %120 = arith.index_cast %119 : i32 to index
    %c1_45 = arith.constant 1 : index
    %c0_46 = arith.constant 0 : index
    %121 = vector.load %arg2[%120, %c1_45, %c0_46] : memref<18x18x8xf32, #tpu.memory_space<vmem>>, vector<1x16x8xf32>
    %122 = vector.shape_cast %121 : vector<1x16x8xf32> to vector<16x8xf32>
    %c1_i32_47 = arith.constant 1 : i32
    %123 = arith.addi %119, %c1_i32_47 : i32
    %124 = arith.index_cast %123 : i32 to index
    %c1_48 = arith.constant 1 : index
    %c0_49 = arith.constant 0 : index
    %125 = vector.load %arg2[%124, %c1_48, %c0_49] : memref<18x18x8xf32, #tpu.memory_space<vmem>>, vector<1x16x8xf32>
    %126 = vector.shape_cast %125 : vector<1x16x8xf32> to vector<16x8xf32>
    %c2_i32_50 = arith.constant 2 : i32
    %127 = arith.addi %119, %c2_i32_50 : i32
    %128 = arith.index_cast %127 : i32 to index
    %c1_51 = arith.constant 1 : index
    %c0_52 = arith.constant 0 : index
    %129 = vector.load %arg2[%128, %c1_51, %c0_52] : memref<18x18x8xf32, #tpu.memory_space<vmem>>, vector<1x16x8xf32>
    %130 = vector.shape_cast %129 : vector<1x16x8xf32> to vector<16x8xf32>
    %c1_i32_53 = arith.constant 1 : i32
    %131 = arith.addi %119, %c1_i32_53 : i32
    %132 = arith.index_cast %131 : i32 to index
    %c0_54 = arith.constant 0 : index
    %c0_55 = arith.constant 0 : index
    %133 = vector.load %arg2[%132, %c0_54, %c0_55] : memref<18x18x8xf32, #tpu.memory_space<vmem>>, vector<1x16x8xf32>
    %134 = vector.shape_cast %133 : vector<1x16x8xf32> to vector<16x8xf32>
    %c1_i32_56 = arith.constant 1 : i32
    %135 = arith.addi %119, %c1_i32_56 : i32
    %136 = arith.index_cast %135 : i32 to index
    %c2_57 = arith.constant 2 : index
    %c0_58 = arith.constant 0 : index
    %137 = vector.load %arg2[%136, %c2_57, %c0_58] : memref<18x18x8xf32, #tpu.memory_space<vmem>>, vector<1x16x8xf32>
    %138 = vector.shape_cast %137 : vector<1x16x8xf32> to vector<16x8xf32>
    %c1_i32_59 = arith.constant 1 : i32
    %139 = arith.addi %119, %c1_i32_59 : i32
    %140 = arith.index_cast %139 : i32 to index
    %c1_60 = arith.constant 1 : index
    %c0_61 = arith.constant 0 : index
    %141 = vector.load %arg3[%140, %c1_60, %c0_61] : memref<18x18x8xf32, #tpu.memory_space<vmem>>, vector<1x16x8xf32>
    %142 = vector.shape_cast %141 : vector<1x16x8xf32> to vector<16x8xf32>
    %c2_i32_62 = arith.constant 2 : i32
    %143 = arith.addi %119, %c2_i32_62 : i32
    %144 = arith.index_cast %143 : i32 to index
    %c1_63 = arith.constant 1 : index
    %c0_64 = arith.constant 0 : index
    %145 = vector.load %arg3[%144, %c1_63, %c0_64] : memref<18x18x8xf32, #tpu.memory_space<vmem>>, vector<1x16x8xf32>
    %146 = vector.shape_cast %145 : vector<1x16x8xf32> to vector<16x8xf32>
    %c1_i32_65 = arith.constant 1 : i32
    %147 = arith.addi %119, %c1_i32_65 : i32
    %148 = arith.index_cast %147 : i32 to index
    %c0_66 = arith.constant 0 : index
    %c0_67 = arith.constant 0 : index
    %149 = vector.load %arg3[%148, %c0_66, %c0_67] : memref<18x18x8xf32, #tpu.memory_space<vmem>>, vector<1x16x8xf32>
    %150 = vector.shape_cast %149 : vector<1x16x8xf32> to vector<16x8xf32>
    %c1_i32_68 = arith.constant 1 : i32
    %151 = arith.addi %119, %c1_i32_68 : i32
    %152 = arith.index_cast %151 : i32 to index
    %c2_69 = arith.constant 2 : index
    %c0_70 = arith.constant 0 : index
    %153 = vector.load %arg3[%152, %c2_69, %c0_70] : memref<18x18x8xf32, #tpu.memory_space<vmem>>, vector<1x16x8xf32>
    %154 = vector.shape_cast %153 : vector<1x16x8xf32> to vector<16x8xf32>
    %c1_i32_71 = arith.constant 1 : i32
    %155 = arith.addi %119, %c1_i32_71 : i32
    %156 = arith.index_cast %155 : i32 to index
    %c1_72 = arith.constant 1 : index
    %c0_73 = arith.constant 0 : index
    %157 = vector.load %arg4[%156, %c1_72, %c0_73] : memref<18x18x8xf32, #tpu.memory_space<vmem>>, vector<1x16x8xf32>
    %158 = vector.shape_cast %157 : vector<1x16x8xf32> to vector<16x8xf32>
    %c1_i32_74 = arith.constant 1 : i32
    %159 = arith.addi %119, %c1_i32_74 : i32
    %160 = arith.index_cast %159 : i32 to index
    %c0_75 = arith.constant 0 : index
    %c0_76 = arith.constant 0 : index
    %161 = vector.load %arg4[%160, %c0_75, %c0_76] : memref<18x18x8xf32, #tpu.memory_space<vmem>>, vector<1x16x8xf32>
    %162 = vector.shape_cast %161 : vector<1x16x8xf32> to vector<16x8xf32>
    %163 = arith.addf %126, %130 : vector<16x8xf32>
    %164 = arith.addf %122, %163 : vector<16x8xf32>
    %cst_77 = arith.constant 5.000000e+00 : f32
    %165 = vector.broadcast %cst_77 : f32 to vector<16x8xf32>
    %166 = arith.mulf %165, %126 : vector<16x8xf32>
    %167 = arith.subf %164, %166 : vector<16x8xf32>
    %168 = arith.addf %167, %134 : vector<16x8xf32>
    %169 = arith.addf %168, %138 : vector<16x8xf32>
    %170 = arith.subf %146, %142 : vector<16x8xf32>
    %171 = arith.mulf %170, %163 : vector<16x8xf32>
    %172 = arith.mulf %158, %171 : vector<16x8xf32>
    %173 = arith.addf %142, %146 : vector<16x8xf32>
    %174 = tpu.reciprocal %173 {approx = true} : vector<16x8xf32> -> vector<16x8xf32>
    %175 = arith.mulf %173, %174 : vector<16x8xf32>
    %cst_78 = arith.constant 2.000000e+00 : f32
    %176 = vector.broadcast %cst_78 : f32 to vector<16x8xf32>
    %177 = arith.subf %176, %175 : vector<16x8xf32>
    %178 = arith.mulf %174, %177 : vector<16x8xf32>
    %179 = arith.mulf %172, %178 : vector<16x8xf32>
    %180 = arith.subf %179, %90 : vector<16x8xf32>
    %181 = arith.subf %154, %142 : vector<16x8xf32>
    %182 = arith.addf %126, %138 : vector<16x8xf32>
    %183 = arith.mulf %181, %182 : vector<16x8xf32>
    %184 = arith.mulf %158, %183 : vector<16x8xf32>
    %185 = arith.addf %142, %154 : vector<16x8xf32>
    %186 = tpu.reciprocal %185 {approx = true} : vector<16x8xf32> -> vector<16x8xf32>
    %187 = arith.mulf %185, %186 : vector<16x8xf32>
    %cst_79 = arith.constant 2.000000e+00 : f32
    %188 = vector.broadcast %cst_79 : f32 to vector<16x8xf32>
    %189 = arith.subf %188, %187 : vector<16x8xf32>
    %190 = arith.mulf %186, %189 : vector<16x8xf32>
    %191 = arith.mulf %184, %190 : vector<16x8xf32>
    %192 = arith.subf %142, %150 : vector<16x8xf32>
    %193 = arith.addf %134, %126 : vector<16x8xf32>
    %194 = arith.mulf %192, %193 : vector<16x8xf32>
    %195 = arith.mulf %162, %194 : vector<16x8xf32>
    %196 = arith.addf %150, %142 : vector<16x8xf32>
    %197 = tpu.reciprocal %196 {approx = true} : vector<16x8xf32> -> vector<16x8xf32>
    %198 = arith.mulf %196, %197 : vector<16x8xf32>
    %cst_80 = arith.constant 2.000000e+00 : f32
    %199 = vector.broadcast %cst_80 : f32 to vector<16x8xf32>
    %200 = arith.subf %199, %198 : vector<16x8xf32>
    %201 = arith.mulf %197, %200 : vector<16x8xf32>
    %202 = arith.mulf %195, %201 : vector<16x8xf32>
    %203 = arith.subf %191, %202 : vector<16x8xf32>
    %204 = arith.subf %169, %180 : vector<16x8xf32>
    %205 = arith.subf %204, %203 : vector<16x8xf32>
    %206 = arith.mulf %205, %205 : vector<16x8xf32>
    %207 = arith.addf %118, %206 : vector<16x8xf32>
    %c2_i32_81 = arith.constant 2 : i32
    %208 = arith.addi %0, %c2_i32_81 : i32
    %209 = arith.index_cast %208 : i32 to index
    %c1_82 = arith.constant 1 : index
    %c0_83 = arith.constant 0 : index
    %210 = vector.load %arg2[%209, %c1_82, %c0_83] : memref<18x18x8xf32, #tpu.memory_space<vmem>>, vector<1x16x8xf32>
    %211 = vector.shape_cast %210 : vector<1x16x8xf32> to vector<16x8xf32>
    %c1_i32_84 = arith.constant 1 : i32
    %212 = arith.addi %208, %c1_i32_84 : i32
    %213 = arith.index_cast %212 : i32 to index
    %c1_85 = arith.constant 1 : index
    %c0_86 = arith.constant 0 : index
    %214 = vector.load %arg2[%213, %c1_85, %c0_86] : memref<18x18x8xf32, #tpu.memory_space<vmem>>, vector<1x16x8xf32>
    %215 = vector.shape_cast %214 : vector<1x16x8xf32> to vector<16x8xf32>
    %c2_i32_87 = arith.constant 2 : i32
    %216 = arith.addi %208, %c2_i32_87 : i32
    %217 = arith.index_cast %216 : i32 to index
    %c1_88 = arith.constant 1 : index
    %c0_89 = arith.constant 0 : index
    %218 = vector.load %arg2[%217, %c1_88, %c0_89] : memref<18x18x8xf32, #tpu.memory_space<vmem>>, vector<1x16x8xf32>
    %219 = vector.shape_cast %218 : vector<1x16x8xf32> to vector<16x8xf32>
    %c1_i32_90 = arith.constant 1 : i32
    %220 = arith.addi %208, %c1_i32_90 : i32
    %221 = arith.index_cast %220 : i32 to index
    %c0_91 = arith.constant 0 : index
    %c0_92 = arith.constant 0 : index
    %222 = vector.load %arg2[%221, %c0_91, %c0_92] : memref<18x18x8xf32, #tpu.memory_space<vmem>>, vector<1x16x8xf32>
    %223 = vector.shape_cast %222 : vector<1x16x8xf32> to vector<16x8xf32>
    %c1_i32_93 = arith.constant 1 : i32
    %224 = arith.addi %208, %c1_i32_93 : i32
    %225 = arith.index_cast %224 : i32 to index
    %c2_94 = arith.constant 2 : index
    %c0_95 = arith.constant 0 : index
    %226 = vector.load %arg2[%225, %c2_94, %c0_95] : memref<18x18x8xf32, #tpu.memory_space<vmem>>, vector<1x16x8xf32>
    %227 = vector.shape_cast %226 : vector<1x16x8xf32> to vector<16x8xf32>
    %c1_i32_96 = arith.constant 1 : i32
    %228 = arith.addi %208, %c1_i32_96 : i32
    %229 = arith.index_cast %228 : i32 to index
    %c1_97 = arith.constant 1 : index
    %c0_98 = arith.constant 0 : index
    %230 = vector.load %arg3[%229, %c1_97, %c0_98] : memref<18x18x8xf32, #tpu.memory_space<vmem>>, vector<1x16x8xf32>
    %231 = vector.shape_cast %230 : vector<1x16x8xf32> to vector<16x8xf32>
    %c2_i32_99 = arith.constant 2 : i32
    %232 = arith.addi %208, %c2_i32_99 : i32
    %233 = arith.index_cast %232 : i32 to index
    %c1_100 = arith.constant 1 : index
    %c0_101 = arith.constant 0 : index
    %234 = vector.load %arg3[%233, %c1_100, %c0_101] : memref<18x18x8xf32, #tpu.memory_space<vmem>>, vector<1x16x8xf32>
    %235 = vector.shape_cast %234 : vector<1x16x8xf32> to vector<16x8xf32>
    %c1_i32_102 = arith.constant 1 : i32
    %236 = arith.addi %208, %c1_i32_102 : i32
    %237 = arith.index_cast %236 : i32 to index
    %c0_103 = arith.constant 0 : index
    %c0_104 = arith.constant 0 : index
    %238 = vector.load %arg3[%237, %c0_103, %c0_104] : memref<18x18x8xf32, #tpu.memory_space<vmem>>, vector<1x16x8xf32>
    %239 = vector.shape_cast %238 : vector<1x16x8xf32> to vector<16x8xf32>
    %c1_i32_105 = arith.constant 1 : i32
    %240 = arith.addi %208, %c1_i32_105 : i32
    %241 = arith.index_cast %240 : i32 to index
    %c2_106 = arith.constant 2 : index
    %c0_107 = arith.constant 0 : index
    %242 = vector.load %arg3[%241, %c2_106, %c0_107] : memref<18x18x8xf32, #tpu.memory_space<vmem>>, vector<1x16x8xf32>
    %243 = vector.shape_cast %242 : vector<1x16x8xf32> to vector<16x8xf32>
    %c1_i32_108 = arith.constant 1 : i32
    %244 = arith.addi %208, %c1_i32_108 : i32
    %245 = arith.index_cast %244 : i32 to index
    %c1_109 = arith.constant 1 : index
    %c0_110 = arith.constant 0 : index
    %246 = vector.load %arg4[%245, %c1_109, %c0_110] : memref<18x18x8xf32, #tpu.memory_space<vmem>>, vector<1x16x8xf32>
    %247 = vector.shape_cast %246 : vector<1x16x8xf32> to vector<16x8xf32>
    %c1_i32_111 = arith.constant 1 : i32
    %248 = arith.addi %208, %c1_i32_111 : i32
    %249 = arith.index_cast %248 : i32 to index
    %c0_112 = arith.constant 0 : index
    %c0_113 = arith.constant 0 : index
    %250 = vector.load %arg4[%249, %c0_112, %c0_113] : memref<18x18x8xf32, #tpu.memory_space<vmem>>, vector<1x16x8xf32>
    %251 = vector.shape_cast %250 : vector<1x16x8xf32> to vector<16x8xf32>
    %252 = arith.addf %215, %219 : vector<16x8xf32>
    %253 = arith.addf %211, %252 : vector<16x8xf32>
    %cst_114 = arith.constant 5.000000e+00 : f32
    %254 = vector.broadcast %cst_114 : f32 to vector<16x8xf32>
    %255 = arith.mulf %254, %215 : vector<16x8xf32>
    %256 = arith.subf %253, %255 : vector<16x8xf32>
    %257 = arith.addf %256, %223 : vector<16x8xf32>
    %258 = arith.addf %257, %227 : vector<16x8xf32>
    %259 = arith.subf %235, %231 : vector<16x8xf32>
    %260 = arith.mulf %259, %252 : vector<16x8xf32>
    %261 = arith.mulf %247, %260 : vector<16x8xf32>
    %262 = arith.addf %231, %235 : vector<16x8xf32>
    %263 = tpu.reciprocal %262 {approx = true} : vector<16x8xf32> -> vector<16x8xf32>
    %264 = arith.mulf %262, %263 : vector<16x8xf32>
    %cst_115 = arith.constant 2.000000e+00 : f32
    %265 = vector.broadcast %cst_115 : f32 to vector<16x8xf32>
    %266 = arith.subf %265, %264 : vector<16x8xf32>
    %267 = arith.mulf %263, %266 : vector<16x8xf32>
    %268 = arith.mulf %261, %267 : vector<16x8xf32>
    %269 = arith.subf %268, %179 : vector<16x8xf32>
    %270 = arith.subf %243, %231 : vector<16x8xf32>
    %271 = arith.addf %215, %227 : vector<16x8xf32>
    %272 = arith.mulf %270, %271 : vector<16x8xf32>
    %273 = arith.mulf %247, %272 : vector<16x8xf32>
    %274 = arith.addf %231, %243 : vector<16x8xf32>
    %275 = tpu.reciprocal %274 {approx = true} : vector<16x8xf32> -> vector<16x8xf32>
    %276 = arith.mulf %274, %275 : vector<16x8xf32>
    %cst_116 = arith.constant 2.000000e+00 : f32
    %277 = vector.broadcast %cst_116 : f32 to vector<16x8xf32>
    %278 = arith.subf %277, %276 : vector<16x8xf32>
    %279 = arith.mulf %275, %278 : vector<16x8xf32>
    %280 = arith.mulf %273, %279 : vector<16x8xf32>
    %281 = arith.subf %231, %239 : vector<16x8xf32>
    %282 = arith.addf %223, %215 : vector<16x8xf32>
    %283 = arith.mulf %281, %282 : vector<16x8xf32>
    %284 = arith.mulf %251, %283 : vector<16x8xf32>
    %285 = arith.addf %239, %231 : vector<16x8xf32>
    %286 = tpu.reciprocal %285 {approx = true} : vector<16x8xf32> -> vector<16x8xf32>
    %287 = arith.mulf %285, %286 : vector<16x8xf32>
    %cst_117 = arith.constant 2.000000e+00 : f32
    %288 = vector.broadcast %cst_117 : f32 to vector<16x8xf32>
    %289 = arith.subf %288, %287 : vector<16x8xf32>
    %290 = arith.mulf %286, %289 : vector<16x8xf32>
    %291 = arith.mulf %284, %290 : vector<16x8xf32>
    %292 = arith.subf %280, %291 : vector<16x8xf32>
    %293 = arith.subf %258, %269 : vector<16x8xf32>
    %294 = arith.subf %293, %292 : vector<16x8xf32>
    %295 = arith.mulf %294, %294 : vector<16x8xf32>
    %296 = arith.addf %207, %295 : vector<16x8xf32>
    %c3_i32 = arith.constant 3 : i32
    %297 = arith.addi %0, %c3_i32 : i32
    %298 = arith.index_cast %297 : i32 to index
    %c1_118 = arith.constant 1 : index
    %c0_119 = arith.constant 0 : index
    %299 = vector.load %arg2[%298, %c1_118, %c0_119] : memref<18x18x8xf32, #tpu.memory_space<vmem>>, vector<1x16x8xf32>
    %300 = vector.shape_cast %299 : vector<1x16x8xf32> to vector<16x8xf32>
    %c1_i32_120 = arith.constant 1 : i32
    %301 = arith.addi %297, %c1_i32_120 : i32
    %302 = arith.index_cast %301 : i32 to index
    %c1_121 = arith.constant 1 : index
    %c0_122 = arith.constant 0 : index
    %303 = vector.load %arg2[%302, %c1_121, %c0_122] : memref<18x18x8xf32, #tpu.memory_space<vmem>>, vector<1x16x8xf32>
    %304 = vector.shape_cast %303 : vector<1x16x8xf32> to vector<16x8xf32>
    %c2_i32_123 = arith.constant 2 : i32
    %305 = arith.addi %297, %c2_i32_123 : i32
    %306 = arith.index_cast %305 : i32 to index
    %c1_124 = arith.constant 1 : index
    %c0_125 = arith.constant 0 : index
    %307 = vector.load %arg2[%306, %c1_124, %c0_125] : memref<18x18x8xf32, #tpu.memory_space<vmem>>, vector<1x16x8xf32>
    %308 = vector.shape_cast %307 : vector<1x16x8xf32> to vector<16x8xf32>
    %c1_i32_126 = arith.constant 1 : i32
    %309 = arith.addi %297, %c1_i32_126 : i32
    %310 = arith.index_cast %309 : i32 to index
    %c0_127 = arith.constant 0 : index
    %c0_128 = arith.constant 0 : index
    %311 = vector.load %arg2[%310, %c0_127, %c0_128] : memref<18x18x8xf32, #tpu.memory_space<vmem>>, vector<1x16x8xf32>
    %312 = vector.shape_cast %311 : vector<1x16x8xf32> to vector<16x8xf32>
    %c1_i32_129 = arith.constant 1 : i32
    %313 = arith.addi %297, %c1_i32_129 : i32
    %314 = arith.index_cast %313 : i32 to index
    %c2_130 = arith.constant 2 : index
    %c0_131 = arith.constant 0 : index
    %315 = vector.load %arg2[%314, %c2_130, %c0_131] : memref<18x18x8xf32, #tpu.memory_space<vmem>>, vector<1x16x8xf32>
    %316 = vector.shape_cast %315 : vector<1x16x8xf32> to vector<16x8xf32>
    %c1_i32_132 = arith.constant 1 : i32
    %317 = arith.addi %297, %c1_i32_132 : i32
    %318 = arith.index_cast %317 : i32 to index
    %c1_133 = arith.constant 1 : index
    %c0_134 = arith.constant 0 : index
    %319 = vector.load %arg3[%318, %c1_133, %c0_134] : memref<18x18x8xf32, #tpu.memory_space<vmem>>, vector<1x16x8xf32>
    %320 = vector.shape_cast %319 : vector<1x16x8xf32> to vector<16x8xf32>
    %c2_i32_135 = arith.constant 2 : i32
    %321 = arith.addi %297, %c2_i32_135 : i32
    %322 = arith.index_cast %321 : i32 to index
    %c1_136 = arith.constant 1 : index
    %c0_137 = arith.constant 0 : index
    %323 = vector.load %arg3[%322, %c1_136, %c0_137] : memref<18x18x8xf32, #tpu.memory_space<vmem>>, vector<1x16x8xf32>
    %324 = vector.shape_cast %323 : vector<1x16x8xf32> to vector<16x8xf32>
    %c1_i32_138 = arith.constant 1 : i32
    %325 = arith.addi %297, %c1_i32_138 : i32
    %326 = arith.index_cast %325 : i32 to index
    %c0_139 = arith.constant 0 : index
    %c0_140 = arith.constant 0 : index
    %327 = vector.load %arg3[%326, %c0_139, %c0_140] : memref<18x18x8xf32, #tpu.memory_space<vmem>>, vector<1x16x8xf32>
    %328 = vector.shape_cast %327 : vector<1x16x8xf32> to vector<16x8xf32>
    %c1_i32_141 = arith.constant 1 : i32
    %329 = arith.addi %297, %c1_i32_141 : i32
    %330 = arith.index_cast %329 : i32 to index
    %c2_142 = arith.constant 2 : index
    %c0_143 = arith.constant 0 : index
    %331 = vector.load %arg3[%330, %c2_142, %c0_143] : memref<18x18x8xf32, #tpu.memory_space<vmem>>, vector<1x16x8xf32>
    %332 = vector.shape_cast %331 : vector<1x16x8xf32> to vector<16x8xf32>
    %c1_i32_144 = arith.constant 1 : i32
    %333 = arith.addi %297, %c1_i32_144 : i32
    %334 = arith.index_cast %333 : i32 to index
    %c1_145 = arith.constant 1 : index
    %c0_146 = arith.constant 0 : index
    %335 = vector.load %arg4[%334, %c1_145, %c0_146] : memref<18x18x8xf32, #tpu.memory_space<vmem>>, vector<1x16x8xf32>
    %336 = vector.shape_cast %335 : vector<1x16x8xf32> to vector<16x8xf32>
    %c1_i32_147 = arith.constant 1 : i32
    %337 = arith.addi %297, %c1_i32_147 : i32
    %338 = arith.index_cast %337 : i32 to index
    %c0_148 = arith.constant 0 : index
    %c0_149 = arith.constant 0 : index
    %339 = vector.load %arg4[%338, %c0_148, %c0_149] : memref<18x18x8xf32, #tpu.memory_space<vmem>>, vector<1x16x8xf32>
    %340 = vector.shape_cast %339 : vector<1x16x8xf32> to vector<16x8xf32>
    %341 = arith.addf %304, %308 : vector<16x8xf32>
    %342 = arith.addf %300, %341 : vector<16x8xf32>
    %cst_150 = arith.constant 5.000000e+00 : f32
    %343 = vector.broadcast %cst_150 : f32 to vector<16x8xf32>
    %344 = arith.mulf %343, %304 : vector<16x8xf32>
    %345 = arith.subf %342, %344 : vector<16x8xf32>
    %346 = arith.addf %345, %312 : vector<16x8xf32>
    %347 = arith.addf %346, %316 : vector<16x8xf32>
    %348 = arith.subf %324, %320 : vector<16x8xf32>
    %349 = arith.mulf %348, %341 : vector<16x8xf32>
    %350 = arith.mulf %336, %349 : vector<16x8xf32>
    %351 = arith.addf %320, %324 : vector<16x8xf32>
    %352 = tpu.reciprocal %351 {approx = true} : vector<16x8xf32> -> vector<16x8xf32>
    %353 = arith.mulf %351, %352 : vector<16x8xf32>
    %cst_151 = arith.constant 2.000000e+00 : f32
    %354 = vector.broadcast %cst_151 : f32 to vector<16x8xf32>
    %355 = arith.subf %354, %353 : vector<16x8xf32>
    %356 = arith.mulf %352, %355 : vector<16x8xf32>
    %357 = arith.mulf %350, %356 : vector<16x8xf32>
    %358 = arith.subf %357, %268 : vector<16x8xf32>
    %359 = arith.subf %332, %320 : vector<16x8xf32>
    %360 = arith.addf %304, %316 : vector<16x8xf32>
    %361 = arith.mulf %359, %360 : vector<16x8xf32>
    %362 = arith.mulf %336, %361 : vector<16x8xf32>
    %363 = arith.addf %320, %332 : vector<16x8xf32>
    %364 = tpu.reciprocal %363 {approx = true} : vector<16x8xf32> -> vector<16x8xf32>
    %365 = arith.mulf %363, %364 : vector<16x8xf32>
    %cst_152 = arith.constant 2.000000e+00 : f32
    %366 = vector.broadcast %cst_152 : f32 to vector<16x8xf32>
    %367 = arith.subf %366, %365 : vector<16x8xf32>
    %368 = arith.mulf %364, %367 : vector<16x8xf32>
    %369 = arith.mulf %362, %368 : vector<16x8xf32>
    %370 = arith.subf %320, %328 : vector<16x8xf32>
    %371 = arith.addf %312, %304 : vector<16x8xf32>
    %372 = arith.mulf %370, %371 : vector<16x8xf32>
    %373 = arith.mulf %340, %372 : vector<16x8xf32>
    %374 = arith.addf %328, %320 : vector<16x8xf32>
    %375 = tpu.reciprocal %374 {approx = true} : vector<16x8xf32> -> vector<16x8xf32>
    %376 = arith.mulf %374, %375 : vector<16x8xf32>
    %cst_153 = arith.constant 2.000000e+00 : f32
    %377 = vector.broadcast %cst_153 : f32 to vector<16x8xf32>
    %378 = arith.subf %377, %376 : vector<16x8xf32>
    %379 = arith.mulf %375, %378 : vector<16x8xf32>
    %380 = arith.mulf %373, %379 : vector<16x8xf32>
    %381 = arith.subf %369, %380 : vector<16x8xf32>
    %382 = arith.subf %347, %358 : vector<16x8xf32>
    %383 = arith.subf %382, %381 : vector<16x8xf32>
    %384 = arith.mulf %383, %383 : vector<16x8xf32>
    %385 = arith.addf %296, %384 : vector<16x8xf32>
    %c4_i32 = arith.constant 4 : i32
    %386 = arith.addi %0, %c4_i32 : i32
    %387 = arith.index_cast %386 : i32 to index
    %c1_154 = arith.constant 1 : index
    %c0_155 = arith.constant 0 : index
    %388 = vector.load %arg2[%387, %c1_154, %c0_155] : memref<18x18x8xf32, #tpu.memory_space<vmem>>, vector<1x16x8xf32>
    %389 = vector.shape_cast %388 : vector<1x16x8xf32> to vector<16x8xf32>
    %c1_i32_156 = arith.constant 1 : i32
    %390 = arith.addi %386, %c1_i32_156 : i32
    %391 = arith.index_cast %390 : i32 to index
    %c1_157 = arith.constant 1 : index
    %c0_158 = arith.constant 0 : index
    %392 = vector.load %arg2[%391, %c1_157, %c0_158] : memref<18x18x8xf32, #tpu.memory_space<vmem>>, vector<1x16x8xf32>
    %393 = vector.shape_cast %392 : vector<1x16x8xf32> to vector<16x8xf32>
    %c2_i32_159 = arith.constant 2 : i32
    %394 = arith.addi %386, %c2_i32_159 : i32
    %395 = arith.index_cast %394 : i32 to index
    %c1_160 = arith.constant 1 : index
    %c0_161 = arith.constant 0 : index
    %396 = vector.load %arg2[%395, %c1_160, %c0_161] : memref<18x18x8xf32, #tpu.memory_space<vmem>>, vector<1x16x8xf32>
    %397 = vector.shape_cast %396 : vector<1x16x8xf32> to vector<16x8xf32>
    %c1_i32_162 = arith.constant 1 : i32
    %398 = arith.addi %386, %c1_i32_162 : i32
    %399 = arith.index_cast %398 : i32 to index
    %c0_163 = arith.constant 0 : index
    %c0_164 = arith.constant 0 : index
    %400 = vector.load %arg2[%399, %c0_163, %c0_164] : memref<18x18x8xf32, #tpu.memory_space<vmem>>, vector<1x16x8xf32>
    %401 = vector.shape_cast %400 : vector<1x16x8xf32> to vector<16x8xf32>
    %c1_i32_165 = arith.constant 1 : i32
    %402 = arith.addi %386, %c1_i32_165 : i32
    %403 = arith.index_cast %402 : i32 to index
    %c2_166 = arith.constant 2 : index
    %c0_167 = arith.constant 0 : index
    %404 = vector.load %arg2[%403, %c2_166, %c0_167] : memref<18x18x8xf32, #tpu.memory_space<vmem>>, vector<1x16x8xf32>
    %405 = vector.shape_cast %404 : vector<1x16x8xf32> to vector<16x8xf32>
    %c1_i32_168 = arith.constant 1 : i32
    %406 = arith.addi %386, %c1_i32_168 : i32
    %407 = arith.index_cast %406 : i32 to index
    %c1_169 = arith.constant 1 : index
    %c0_170 = arith.constant 0 : index
    %408 = vector.load %arg3[%407, %c1_169, %c0_170] : memref<18x18x8xf32, #tpu.memory_space<vmem>>, vector<1x16x8xf32>
    %409 = vector.shape_cast %408 : vector<1x16x8xf32> to vector<16x8xf32>
    %c2_i32_171 = arith.constant 2 : i32
    %410 = arith.addi %386, %c2_i32_171 : i32
    %411 = arith.index_cast %410 : i32 to index
    %c1_172 = arith.constant 1 : index
    %c0_173 = arith.constant 0 : index
    %412 = vector.load %arg3[%411, %c1_172, %c0_173] : memref<18x18x8xf32, #tpu.memory_space<vmem>>, vector<1x16x8xf32>
    %413 = vector.shape_cast %412 : vector<1x16x8xf32> to vector<16x8xf32>
    %c1_i32_174 = arith.constant 1 : i32
    %414 = arith.addi %386, %c1_i32_174 : i32
    %415 = arith.index_cast %414 : i32 to index
    %c0_175 = arith.constant 0 : index
    %c0_176 = arith.constant 0 : index
    %416 = vector.load %arg3[%415, %c0_175, %c0_176] : memref<18x18x8xf32, #tpu.memory_space<vmem>>, vector<1x16x8xf32>
    %417 = vector.shape_cast %416 : vector<1x16x8xf32> to vector<16x8xf32>
    %c1_i32_177 = arith.constant 1 : i32
    %418 = arith.addi %386, %c1_i32_177 : i32
    %419 = arith.index_cast %418 : i32 to index
    %c2_178 = arith.constant 2 : index
    %c0_179 = arith.constant 0 : index
    %420 = vector.load %arg3[%419, %c2_178, %c0_179] : memref<18x18x8xf32, #tpu.memory_space<vmem>>, vector<1x16x8xf32>
    %421 = vector.shape_cast %420 : vector<1x16x8xf32> to vector<16x8xf32>
    %c1_i32_180 = arith.constant 1 : i32
    %422 = arith.addi %386, %c1_i32_180 : i32
    %423 = arith.index_cast %422 : i32 to index
    %c1_181 = arith.constant 1 : index
    %c0_182 = arith.constant 0 : index
    %424 = vector.load %arg4[%423, %c1_181, %c0_182] : memref<18x18x8xf32, #tpu.memory_space<vmem>>, vector<1x16x8xf32>
    %425 = vector.shape_cast %424 : vector<1x16x8xf32> to vector<16x8xf32>
    %c1_i32_183 = arith.constant 1 : i32
    %426 = arith.addi %386, %c1_i32_183 : i32
    %427 = arith.index_cast %426 : i32 to index
    %c0_184 = arith.constant 0 : index
    %c0_185 = arith.constant 0 : index
    %428 = vector.load %arg4[%427, %c0_184, %c0_185] : memref<18x18x8xf32, #tpu.memory_space<vmem>>, vector<1x16x8xf32>
    %429 = vector.shape_cast %428 : vector<1x16x8xf32> to vector<16x8xf32>
    %430 = arith.addf %393, %397 : vector<16x8xf32>
    %431 = arith.addf %389, %430 : vector<16x8xf32>
    %cst_186 = arith.constant 5.000000e+00 : f32
    %432 = vector.broadcast %cst_186 : f32 to vector<16x8xf32>
    %433 = arith.mulf %432, %393 : vector<16x8xf32>
    %434 = arith.subf %431, %433 : vector<16x8xf32>
    %435 = arith.addf %434, %401 : vector<16x8xf32>
    %436 = arith.addf %435, %405 : vector<16x8xf32>
    %437 = arith.subf %413, %409 : vector<16x8xf32>
    %438 = arith.mulf %437, %430 : vector<16x8xf32>
    %439 = arith.mulf %425, %438 : vector<16x8xf32>
    %440 = arith.addf %409, %413 : vector<16x8xf32>
    %441 = tpu.reciprocal %440 {approx = true} : vector<16x8xf32> -> vector<16x8xf32>
    %442 = arith.mulf %440, %441 : vector<16x8xf32>
    %cst_187 = arith.constant 2.000000e+00 : f32
    %443 = vector.broadcast %cst_187 : f32 to vector<16x8xf32>
    %444 = arith.subf %443, %442 : vector<16x8xf32>
    %445 = arith.mulf %441, %444 : vector<16x8xf32>
    %446 = arith.mulf %439, %445 : vector<16x8xf32>
    %447 = arith.subf %446, %357 : vector<16x8xf32>
    %448 = arith.subf %421, %409 : vector<16x8xf32>
    %449 = arith.addf %393, %405 : vector<16x8xf32>
    %450 = arith.mulf %448, %449 : vector<16x8xf32>
    %451 = arith.mulf %425, %450 : vector<16x8xf32>
    %452 = arith.addf %409, %421 : vector<16x8xf32>
    %453 = tpu.reciprocal %452 {approx = true} : vector<16x8xf32> -> vector<16x8xf32>
    %454 = arith.mulf %452, %453 : vector<16x8xf32>
    %cst_188 = arith.constant 2.000000e+00 : f32
    %455 = vector.broadcast %cst_188 : f32 to vector<16x8xf32>
    %456 = arith.subf %455, %454 : vector<16x8xf32>
    %457 = arith.mulf %453, %456 : vector<16x8xf32>
    %458 = arith.mulf %451, %457 : vector<16x8xf32>
    %459 = arith.subf %409, %417 : vector<16x8xf32>
    %460 = arith.addf %401, %393 : vector<16x8xf32>
    %461 = arith.mulf %459, %460 : vector<16x8xf32>
    %462 = arith.mulf %429, %461 : vector<16x8xf32>
    %463 = arith.addf %417, %409 : vector<16x8xf32>
    %464 = tpu.reciprocal %463 {approx = true} : vector<16x8xf32> -> vector<16x8xf32>
    %465 = arith.mulf %463, %464 : vector<16x8xf32>
    %cst_189 = arith.constant 2.000000e+00 : f32
    %466 = vector.broadcast %cst_189 : f32 to vector<16x8xf32>
    %467 = arith.subf %466, %465 : vector<16x8xf32>
    %468 = arith.mulf %464, %467 : vector<16x8xf32>
    %469 = arith.mulf %462, %468 : vector<16x8xf32>
    %470 = arith.subf %458, %469 : vector<16x8xf32>
    %471 = arith.subf %436, %447 : vector<16x8xf32>
    %472 = arith.subf %471, %470 : vector<16x8xf32>
    %473 = arith.mulf %472, %472 : vector<16x8xf32>
    %474 = arith.addf %385, %473 : vector<16x8xf32>
    %c5_i32 = arith.constant 5 : i32
    %475 = arith.addi %0, %c5_i32 : i32
    %476 = arith.index_cast %475 : i32 to index
    %c1_190 = arith.constant 1 : index
    %c0_191 = arith.constant 0 : index
    %477 = vector.load %arg2[%476, %c1_190, %c0_191] : memref<18x18x8xf32, #tpu.memory_space<vmem>>, vector<1x16x8xf32>
    %478 = vector.shape_cast %477 : vector<1x16x8xf32> to vector<16x8xf32>
    %c1_i32_192 = arith.constant 1 : i32
    %479 = arith.addi %475, %c1_i32_192 : i32
    %480 = arith.index_cast %479 : i32 to index
    %c1_193 = arith.constant 1 : index
    %c0_194 = arith.constant 0 : index
    %481 = vector.load %arg2[%480, %c1_193, %c0_194] : memref<18x18x8xf32, #tpu.memory_space<vmem>>, vector<1x16x8xf32>
    %482 = vector.shape_cast %481 : vector<1x16x8xf32> to vector<16x8xf32>
    %c2_i32_195 = arith.constant 2 : i32
    %483 = arith.addi %475, %c2_i32_195 : i32
    %484 = arith.index_cast %483 : i32 to index
    %c1_196 = arith.constant 1 : index
    %c0_197 = arith.constant 0 : index
    %485 = vector.load %arg2[%484, %c1_196, %c0_197] : memref<18x18x8xf32, #tpu.memory_space<vmem>>, vector<1x16x8xf32>
    %486 = vector.shape_cast %485 : vector<1x16x8xf32> to vector<16x8xf32>
    %c1_i32_198 = arith.constant 1 : i32
    %487 = arith.addi %475, %c1_i32_198 : i32
    %488 = arith.index_cast %487 : i32 to index
    %c0_199 = arith.constant 0 : index
    %c0_200 = arith.constant 0 : index
    %489 = vector.load %arg2[%488, %c0_199, %c0_200] : memref<18x18x8xf32, #tpu.memory_space<vmem>>, vector<1x16x8xf32>
    %490 = vector.shape_cast %489 : vector<1x16x8xf32> to vector<16x8xf32>
    %c1_i32_201 = arith.constant 1 : i32
    %491 = arith.addi %475, %c1_i32_201 : i32
    %492 = arith.index_cast %491 : i32 to index
    %c2_202 = arith.constant 2 : index
    %c0_203 = arith.constant 0 : index
    %493 = vector.load %arg2[%492, %c2_202, %c0_203] : memref<18x18x8xf32, #tpu.memory_space<vmem>>, vector<1x16x8xf32>
    %494 = vector.shape_cast %493 : vector<1x16x8xf32> to vector<16x8xf32>
    %c1_i32_204 = arith.constant 1 : i32
    %495 = arith.addi %475, %c1_i32_204 : i32
    %496 = arith.index_cast %495 : i32 to index
    %c1_205 = arith.constant 1 : index
    %c0_206 = arith.constant 0 : index
    %497 = vector.load %arg3[%496, %c1_205, %c0_206] : memref<18x18x8xf32, #tpu.memory_space<vmem>>, vector<1x16x8xf32>
    %498 = vector.shape_cast %497 : vector<1x16x8xf32> to vector<16x8xf32>
    %c2_i32_207 = arith.constant 2 : i32
    %499 = arith.addi %475, %c2_i32_207 : i32
    %500 = arith.index_cast %499 : i32 to index
    %c1_208 = arith.constant 1 : index
    %c0_209 = arith.constant 0 : index
    %501 = vector.load %arg3[%500, %c1_208, %c0_209] : memref<18x18x8xf32, #tpu.memory_space<vmem>>, vector<1x16x8xf32>
    %502 = vector.shape_cast %501 : vector<1x16x8xf32> to vector<16x8xf32>
    %c1_i32_210 = arith.constant 1 : i32
    %503 = arith.addi %475, %c1_i32_210 : i32
    %504 = arith.index_cast %503 : i32 to index
    %c0_211 = arith.constant 0 : index
    %c0_212 = arith.constant 0 : index
    %505 = vector.load %arg3[%504, %c0_211, %c0_212] : memref<18x18x8xf32, #tpu.memory_space<vmem>>, vector<1x16x8xf32>
    %506 = vector.shape_cast %505 : vector<1x16x8xf32> to vector<16x8xf32>
    %c1_i32_213 = arith.constant 1 : i32
    %507 = arith.addi %475, %c1_i32_213 : i32
    %508 = arith.index_cast %507 : i32 to index
    %c2_214 = arith.constant 2 : index
    %c0_215 = arith.constant 0 : index
    %509 = vector.load %arg3[%508, %c2_214, %c0_215] : memref<18x18x8xf32, #tpu.memory_space<vmem>>, vector<1x16x8xf32>
    %510 = vector.shape_cast %509 : vector<1x16x8xf32> to vector<16x8xf32>
    %c1_i32_216 = arith.constant 1 : i32
    %511 = arith.addi %475, %c1_i32_216 : i32
    %512 = arith.index_cast %511 : i32 to index
    %c1_217 = arith.constant 1 : index
    %c0_218 = arith.constant 0 : index
    %513 = vector.load %arg4[%512, %c1_217, %c0_218] : memref<18x18x8xf32, #tpu.memory_space<vmem>>, vector<1x16x8xf32>
    %514 = vector.shape_cast %513 : vector<1x16x8xf32> to vector<16x8xf32>
    %c1_i32_219 = arith.constant 1 : i32
    %515 = arith.addi %475, %c1_i32_219 : i32
    %516 = arith.index_cast %515 : i32 to index
    %c0_220 = arith.constant 0 : index
    %c0_221 = arith.constant 0 : index
    %517 = vector.load %arg4[%516, %c0_220, %c0_221] : memref<18x18x8xf32, #tpu.memory_space<vmem>>, vector<1x16x8xf32>
    %518 = vector.shape_cast %517 : vector<1x16x8xf32> to vector<16x8xf32>
    %519 = arith.addf %482, %486 : vector<16x8xf32>
    %520 = arith.addf %478, %519 : vector<16x8xf32>
    %cst_222 = arith.constant 5.000000e+00 : f32
    %521 = vector.broadcast %cst_222 : f32 to vector<16x8xf32>
    %522 = arith.mulf %521, %482 : vector<16x8xf32>
    %523 = arith.subf %520, %522 : vector<16x8xf32>
    %524 = arith.addf %523, %490 : vector<16x8xf32>
    %525 = arith.addf %524, %494 : vector<16x8xf32>
    %526 = arith.subf %502, %498 : vector<16x8xf32>
    %527 = arith.mulf %526, %519 : vector<16x8xf32>
    %528 = arith.mulf %514, %527 : vector<16x8xf32>
    %529 = arith.addf %498, %502 : vector<16x8xf32>
    %530 = tpu.reciprocal %529 {approx = true} : vector<16x8xf32> -> vector<16x8xf32>
    %531 = arith.mulf %529, %530 : vector<16x8xf32>
    %cst_223 = arith.constant 2.000000e+00 : f32
    %532 = vector.broadcast %cst_223 : f32 to vector<16x8xf32>
    %533 = arith.subf %532, %531 : vector<16x8xf32>
    %534 = arith.mulf %530, %533 : vector<16x8xf32>
    %535 = arith.mulf %528, %534 : vector<16x8xf32>
    %536 = arith.subf %535, %446 : vector<16x8xf32>
    %537 = arith.subf %510, %498 : vector<16x8xf32>
    %538 = arith.addf %482, %494 : vector<16x8xf32>
    %539 = arith.mulf %537, %538 : vector<16x8xf32>
    %540 = arith.mulf %514, %539 : vector<16x8xf32>
    %541 = arith.addf %498, %510 : vector<16x8xf32>
    %542 = tpu.reciprocal %541 {approx = true} : vector<16x8xf32> -> vector<16x8xf32>
    %543 = arith.mulf %541, %542 : vector<16x8xf32>
    %cst_224 = arith.constant 2.000000e+00 : f32
    %544 = vector.broadcast %cst_224 : f32 to vector<16x8xf32>
    %545 = arith.subf %544, %543 : vector<16x8xf32>
    %546 = arith.mulf %542, %545 : vector<16x8xf32>
    %547 = arith.mulf %540, %546 : vector<16x8xf32>
    %548 = arith.subf %498, %506 : vector<16x8xf32>
    %549 = arith.addf %490, %482 : vector<16x8xf32>
    %550 = arith.mulf %548, %549 : vector<16x8xf32>
    %551 = arith.mulf %518, %550 : vector<16x8xf32>
    %552 = arith.addf %506, %498 : vector<16x8xf32>
    %553 = tpu.reciprocal %552 {approx = true} : vector<16x8xf32> -> vector<16x8xf32>
    %554 = arith.mulf %552, %553 : vector<16x8xf32>
    %cst_225 = arith.constant 2.000000e+00 : f32
    %555 = vector.broadcast %cst_225 : f32 to vector<16x8xf32>
    %556 = arith.subf %555, %554 : vector<16x8xf32>
    %557 = arith.mulf %553, %556 : vector<16x8xf32>
    %558 = arith.mulf %551, %557 : vector<16x8xf32>
    %559 = arith.subf %547, %558 : vector<16x8xf32>
    %560 = arith.subf %525, %536 : vector<16x8xf32>
    %561 = arith.subf %560, %559 : vector<16x8xf32>
    %562 = arith.mulf %561, %561 : vector<16x8xf32>
    %563 = arith.addf %474, %562 : vector<16x8xf32>
    %c6_i32 = arith.constant 6 : i32
    %564 = arith.addi %0, %c6_i32 : i32
    %565 = arith.index_cast %564 : i32 to index
    %c1_226 = arith.constant 1 : index
    %c0_227 = arith.constant 0 : index
    %566 = vector.load %arg2[%565, %c1_226, %c0_227] : memref<18x18x8xf32, #tpu.memory_space<vmem>>, vector<1x16x8xf32>
    %567 = vector.shape_cast %566 : vector<1x16x8xf32> to vector<16x8xf32>
    %c1_i32_228 = arith.constant 1 : i32
    %568 = arith.addi %564, %c1_i32_228 : i32
    %569 = arith.index_cast %568 : i32 to index
    %c1_229 = arith.constant 1 : index
    %c0_230 = arith.constant 0 : index
    %570 = vector.load %arg2[%569, %c1_229, %c0_230] : memref<18x18x8xf32, #tpu.memory_space<vmem>>, vector<1x16x8xf32>
    %571 = vector.shape_cast %570 : vector<1x16x8xf32> to vector<16x8xf32>
    %c2_i32_231 = arith.constant 2 : i32
    %572 = arith.addi %564, %c2_i32_231 : i32
    %573 = arith.index_cast %572 : i32 to index
    %c1_232 = arith.constant 1 : index
    %c0_233 = arith.constant 0 : index
    %574 = vector.load %arg2[%573, %c1_232, %c0_233] : memref<18x18x8xf32, #tpu.memory_space<vmem>>, vector<1x16x8xf32>
    %575 = vector.shape_cast %574 : vector<1x16x8xf32> to vector<16x8xf32>
    %c1_i32_234 = arith.constant 1 : i32
    %576 = arith.addi %564, %c1_i32_234 : i32
    %577 = arith.index_cast %576 : i32 to index
    %c0_235 = arith.constant 0 : index
    %c0_236 = arith.constant 0 : index
    %578 = vector.load %arg2[%577, %c0_235, %c0_236] : memref<18x18x8xf32, #tpu.memory_space<vmem>>, vector<1x16x8xf32>
    %579 = vector.shape_cast %578 : vector<1x16x8xf32> to vector<16x8xf32>
    %c1_i32_237 = arith.constant 1 : i32
    %580 = arith.addi %564, %c1_i32_237 : i32
    %581 = arith.index_cast %580 : i32 to index
    %c2_238 = arith.constant 2 : index
    %c0_239 = arith.constant 0 : index
    %582 = vector.load %arg2[%581, %c2_238, %c0_239] : memref<18x18x8xf32, #tpu.memory_space<vmem>>, vector<1x16x8xf32>
    %583 = vector.shape_cast %582 : vector<1x16x8xf32> to vector<16x8xf32>
    %c1_i32_240 = arith.constant 1 : i32
    %584 = arith.addi %564, %c1_i32_240 : i32
    %585 = arith.index_cast %584 : i32 to index
    %c1_241 = arith.constant 1 : index
    %c0_242 = arith.constant 0 : index
    %586 = vector.load %arg3[%585, %c1_241, %c0_242] : memref<18x18x8xf32, #tpu.memory_space<vmem>>, vector<1x16x8xf32>
    %587 = vector.shape_cast %586 : vector<1x16x8xf32> to vector<16x8xf32>
    %c2_i32_243 = arith.constant 2 : i32
    %588 = arith.addi %564, %c2_i32_243 : i32
    %589 = arith.index_cast %588 : i32 to index
    %c1_244 = arith.constant 1 : index
    %c0_245 = arith.constant 0 : index
    %590 = vector.load %arg3[%589, %c1_244, %c0_245] : memref<18x18x8xf32, #tpu.memory_space<vmem>>, vector<1x16x8xf32>
    %591 = vector.shape_cast %590 : vector<1x16x8xf32> to vector<16x8xf32>
    %c1_i32_246 = arith.constant 1 : i32
    %592 = arith.addi %564, %c1_i32_246 : i32
    %593 = arith.index_cast %592 : i32 to index
    %c0_247 = arith.constant 0 : index
    %c0_248 = arith.constant 0 : index
    %594 = vector.load %arg3[%593, %c0_247, %c0_248] : memref<18x18x8xf32, #tpu.memory_space<vmem>>, vector<1x16x8xf32>
    %595 = vector.shape_cast %594 : vector<1x16x8xf32> to vector<16x8xf32>
    %c1_i32_249 = arith.constant 1 : i32
    %596 = arith.addi %564, %c1_i32_249 : i32
    %597 = arith.index_cast %596 : i32 to index
    %c2_250 = arith.constant 2 : index
    %c0_251 = arith.constant 0 : index
    %598 = vector.load %arg3[%597, %c2_250, %c0_251] : memref<18x18x8xf32, #tpu.memory_space<vmem>>, vector<1x16x8xf32>
    %599 = vector.shape_cast %598 : vector<1x16x8xf32> to vector<16x8xf32>
    %c1_i32_252 = arith.constant 1 : i32
    %600 = arith.addi %564, %c1_i32_252 : i32
    %601 = arith.index_cast %600 : i32 to index
    %c1_253 = arith.constant 1 : index
    %c0_254 = arith.constant 0 : index
    %602 = vector.load %arg4[%601, %c1_253, %c0_254] : memref<18x18x8xf32, #tpu.memory_space<vmem>>, vector<1x16x8xf32>
    %603 = vector.shape_cast %602 : vector<1x16x8xf32> to vector<16x8xf32>
    %c1_i32_255 = arith.constant 1 : i32
    %604 = arith.addi %564, %c1_i32_255 : i32
    %605 = arith.index_cast %604 : i32 to index
    %c0_256 = arith.constant 0 : index
    %c0_257 = arith.constant 0 : index
    %606 = vector.load %arg4[%605, %c0_256, %c0_257] : memref<18x18x8xf32, #tpu.memory_space<vmem>>, vector<1x16x8xf32>
    %607 = vector.shape_cast %606 : vector<1x16x8xf32> to vector<16x8xf32>
    %608 = arith.addf %571, %575 : vector<16x8xf32>
    %609 = arith.addf %567, %608 : vector<16x8xf32>
    %cst_258 = arith.constant 5.000000e+00 : f32
    %610 = vector.broadcast %cst_258 : f32 to vector<16x8xf32>
    %611 = arith.mulf %610, %571 : vector<16x8xf32>
    %612 = arith.subf %609, %611 : vector<16x8xf32>
    %613 = arith.addf %612, %579 : vector<16x8xf32>
    %614 = arith.addf %613, %583 : vector<16x8xf32>
    %615 = arith.subf %591, %587 : vector<16x8xf32>
    %616 = arith.mulf %615, %608 : vector<16x8xf32>
    %617 = arith.mulf %603, %616 : vector<16x8xf32>
    %618 = arith.addf %587, %591 : vector<16x8xf32>
    %619 = tpu.reciprocal %618 {approx = true} : vector<16x8xf32> -> vector<16x8xf32>
    %620 = arith.mulf %618, %619 : vector<16x8xf32>
    %cst_259 = arith.constant 2.000000e+00 : f32
    %621 = vector.broadcast %cst_259 : f32 to vector<16x8xf32>
    %622 = arith.subf %621, %620 : vector<16x8xf32>
    %623 = arith.mulf %619, %622 : vector<16x8xf32>
    %624 = arith.mulf %617, %623 : vector<16x8xf32>
    %625 = arith.subf %624, %535 : vector<16x8xf32>
    %626 = arith.subf %599, %587 : vector<16x8xf32>
    %627 = arith.addf %571, %583 : vector<16x8xf32>
    %628 = arith.mulf %626, %627 : vector<16x8xf32>
    %629 = arith.mulf %603, %628 : vector<16x8xf32>
    %630 = arith.addf %587, %599 : vector<16x8xf32>
    %631 = tpu.reciprocal %630 {approx = true} : vector<16x8xf32> -> vector<16x8xf32>
    %632 = arith.mulf %630, %631 : vector<16x8xf32>
    %cst_260 = arith.constant 2.000000e+00 : f32
    %633 = vector.broadcast %cst_260 : f32 to vector<16x8xf32>
    %634 = arith.subf %633, %632 : vector<16x8xf32>
    %635 = arith.mulf %631, %634 : vector<16x8xf32>
    %636 = arith.mulf %629, %635 : vector<16x8xf32>
    %637 = arith.subf %587, %595 : vector<16x8xf32>
    %638 = arith.addf %579, %571 : vector<16x8xf32>
    %639 = arith.mulf %637, %638 : vector<16x8xf32>
    %640 = arith.mulf %607, %639 : vector<16x8xf32>
    %641 = arith.addf %595, %587 : vector<16x8xf32>
    %642 = tpu.reciprocal %641 {approx = true} : vector<16x8xf32> -> vector<16x8xf32>
    %643 = arith.mulf %641, %642 : vector<16x8xf32>
    %cst_261 = arith.constant 2.000000e+00 : f32
    %644 = vector.broadcast %cst_261 : f32 to vector<16x8xf32>
    %645 = arith.subf %644, %643 : vector<16x8xf32>
    %646 = arith.mulf %642, %645 : vector<16x8xf32>
    %647 = arith.mulf %640, %646 : vector<16x8xf32>
    %648 = arith.subf %636, %647 : vector<16x8xf32>
    %649 = arith.subf %614, %625 : vector<16x8xf32>
    %650 = arith.subf %649, %648 : vector<16x8xf32>
    %651 = arith.mulf %650, %650 : vector<16x8xf32>
    %652 = arith.addf %563, %651 : vector<16x8xf32>
    %c7_i32 = arith.constant 7 : i32
    %653 = arith.addi %0, %c7_i32 : i32
    %654 = arith.index_cast %653 : i32 to index
    %c1_262 = arith.constant 1 : index
    %c0_263 = arith.constant 0 : index
    %655 = vector.load %arg2[%654, %c1_262, %c0_263] : memref<18x18x8xf32, #tpu.memory_space<vmem>>, vector<1x16x8xf32>
    %656 = vector.shape_cast %655 : vector<1x16x8xf32> to vector<16x8xf32>
    %c1_i32_264 = arith.constant 1 : i32
    %657 = arith.addi %653, %c1_i32_264 : i32
    %658 = arith.index_cast %657 : i32 to index
    %c1_265 = arith.constant 1 : index
    %c0_266 = arith.constant 0 : index
    %659 = vector.load %arg2[%658, %c1_265, %c0_266] : memref<18x18x8xf32, #tpu.memory_space<vmem>>, vector<1x16x8xf32>
    %660 = vector.shape_cast %659 : vector<1x16x8xf32> to vector<16x8xf32>
    %c2_i32_267 = arith.constant 2 : i32
    %661 = arith.addi %653, %c2_i32_267 : i32
    %662 = arith.index_cast %661 : i32 to index
    %c1_268 = arith.constant 1 : index
    %c0_269 = arith.constant 0 : index
    %663 = vector.load %arg2[%662, %c1_268, %c0_269] : memref<18x18x8xf32, #tpu.memory_space<vmem>>, vector<1x16x8xf32>
    %664 = vector.shape_cast %663 : vector<1x16x8xf32> to vector<16x8xf32>
    %c1_i32_270 = arith.constant 1 : i32
    %665 = arith.addi %653, %c1_i32_270 : i32
    %666 = arith.index_cast %665 : i32 to index
    %c0_271 = arith.constant 0 : index
    %c0_272 = arith.constant 0 : index
    %667 = vector.load %arg2[%666, %c0_271, %c0_272] : memref<18x18x8xf32, #tpu.memory_space<vmem>>, vector<1x16x8xf32>
    %668 = vector.shape_cast %667 : vector<1x16x8xf32> to vector<16x8xf32>
    %c1_i32_273 = arith.constant 1 : i32
    %669 = arith.addi %653, %c1_i32_273 : i32
    %670 = arith.index_cast %669 : i32 to index
    %c2_274 = arith.constant 2 : index
    %c0_275 = arith.constant 0 : index
    %671 = vector.load %arg2[%670, %c2_274, %c0_275] : memref<18x18x8xf32, #tpu.memory_space<vmem>>, vector<1x16x8xf32>
    %672 = vector.shape_cast %671 : vector<1x16x8xf32> to vector<16x8xf32>
    %c1_i32_276 = arith.constant 1 : i32
    %673 = arith.addi %653, %c1_i32_276 : i32
    %674 = arith.index_cast %673 : i32 to index
    %c1_277 = arith.constant 1 : index
    %c0_278 = arith.constant 0 : index
    %675 = vector.load %arg3[%674, %c1_277, %c0_278] : memref<18x18x8xf32, #tpu.memory_space<vmem>>, vector<1x16x8xf32>
    %676 = vector.shape_cast %675 : vector<1x16x8xf32> to vector<16x8xf32>
    %c2_i32_279 = arith.constant 2 : i32
    %677 = arith.addi %653, %c2_i32_279 : i32
    %678 = arith.index_cast %677 : i32 to index
    %c1_280 = arith.constant 1 : index
    %c0_281 = arith.constant 0 : index
    %679 = vector.load %arg3[%678, %c1_280, %c0_281] : memref<18x18x8xf32, #tpu.memory_space<vmem>>, vector<1x16x8xf32>
    %680 = vector.shape_cast %679 : vector<1x16x8xf32> to vector<16x8xf32>
    %c1_i32_282 = arith.constant 1 : i32
    %681 = arith.addi %653, %c1_i32_282 : i32
    %682 = arith.index_cast %681 : i32 to index
    %c0_283 = arith.constant 0 : index
    %c0_284 = arith.constant 0 : index
    %683 = vector.load %arg3[%682, %c0_283, %c0_284] : memref<18x18x8xf32, #tpu.memory_space<vmem>>, vector<1x16x8xf32>
    %684 = vector.shape_cast %683 : vector<1x16x8xf32> to vector<16x8xf32>
    %c1_i32_285 = arith.constant 1 : i32
    %685 = arith.addi %653, %c1_i32_285 : i32
    %686 = arith.index_cast %685 : i32 to index
    %c2_286 = arith.constant 2 : index
    %c0_287 = arith.constant 0 : index
    %687 = vector.load %arg3[%686, %c2_286, %c0_287] : memref<18x18x8xf32, #tpu.memory_space<vmem>>, vector<1x16x8xf32>
    %688 = vector.shape_cast %687 : vector<1x16x8xf32> to vector<16x8xf32>
    %c1_i32_288 = arith.constant 1 : i32
    %689 = arith.addi %653, %c1_i32_288 : i32
    %690 = arith.index_cast %689 : i32 to index
    %c1_289 = arith.constant 1 : index
    %c0_290 = arith.constant 0 : index
    %691 = vector.load %arg4[%690, %c1_289, %c0_290] : memref<18x18x8xf32, #tpu.memory_space<vmem>>, vector<1x16x8xf32>
    %692 = vector.shape_cast %691 : vector<1x16x8xf32> to vector<16x8xf32>
    %c1_i32_291 = arith.constant 1 : i32
    %693 = arith.addi %653, %c1_i32_291 : i32
    %694 = arith.index_cast %693 : i32 to index
    %c0_292 = arith.constant 0 : index
    %c0_293 = arith.constant 0 : index
    %695 = vector.load %arg4[%694, %c0_292, %c0_293] : memref<18x18x8xf32, #tpu.memory_space<vmem>>, vector<1x16x8xf32>
    %696 = vector.shape_cast %695 : vector<1x16x8xf32> to vector<16x8xf32>
    %697 = arith.addf %660, %664 : vector<16x8xf32>
    %698 = arith.addf %656, %697 : vector<16x8xf32>
    %cst_294 = arith.constant 5.000000e+00 : f32
    %699 = vector.broadcast %cst_294 : f32 to vector<16x8xf32>
    %700 = arith.mulf %699, %660 : vector<16x8xf32>
    %701 = arith.subf %698, %700 : vector<16x8xf32>
    %702 = arith.addf %701, %668 : vector<16x8xf32>
    %703 = arith.addf %702, %672 : vector<16x8xf32>
    %704 = arith.subf %680, %676 : vector<16x8xf32>
    %705 = arith.mulf %704, %697 : vector<16x8xf32>
    %706 = arith.mulf %692, %705 : vector<16x8xf32>
    %707 = arith.addf %676, %680 : vector<16x8xf32>
    %708 = tpu.reciprocal %707 {approx = true} : vector<16x8xf32> -> vector<16x8xf32>
    %709 = arith.mulf %707, %708 : vector<16x8xf32>
    %cst_295 = arith.constant 2.000000e+00 : f32
    %710 = vector.broadcast %cst_295 : f32 to vector<16x8xf32>
    %711 = arith.subf %710, %709 : vector<16x8xf32>
    %712 = arith.mulf %708, %711 : vector<16x8xf32>
    %713 = arith.mulf %706, %712 : vector<16x8xf32>
    %714 = arith.subf %713, %624 : vector<16x8xf32>
    %715 = arith.subf %688, %676 : vector<16x8xf32>
    %716 = arith.addf %660, %672 : vector<16x8xf32>
    %717 = arith.mulf %715, %716 : vector<16x8xf32>
    %718 = arith.mulf %692, %717 : vector<16x8xf32>
    %719 = arith.addf %676, %688 : vector<16x8xf32>
    %720 = tpu.reciprocal %719 {approx = true} : vector<16x8xf32> -> vector<16x8xf32>
    %721 = arith.mulf %719, %720 : vector<16x8xf32>
    %cst_296 = arith.constant 2.000000e+00 : f32
    %722 = vector.broadcast %cst_296 : f32 to vector<16x8xf32>
    %723 = arith.subf %722, %721 : vector<16x8xf32>
    %724 = arith.mulf %720, %723 : vector<16x8xf32>
    %725 = arith.mulf %718, %724 : vector<16x8xf32>
    %726 = arith.subf %676, %684 : vector<16x8xf32>
    %727 = arith.addf %668, %660 : vector<16x8xf32>
    %728 = arith.mulf %726, %727 : vector<16x8xf32>
    %729 = arith.mulf %696, %728 : vector<16x8xf32>
    %730 = arith.addf %684, %676 : vector<16x8xf32>
    %731 = tpu.reciprocal %730 {approx = true} : vector<16x8xf32> -> vector<16x8xf32>
    %732 = arith.mulf %730, %731 : vector<16x8xf32>
    %cst_297 = arith.constant 2.000000e+00 : f32
    %733 = vector.broadcast %cst_297 : f32 to vector<16x8xf32>
    %734 = arith.subf %733, %732 : vector<16x8xf32>
    %735 = arith.mulf %731, %734 : vector<16x8xf32>
    %736 = arith.mulf %729, %735 : vector<16x8xf32>
    %737 = arith.subf %725, %736 : vector<16x8xf32>
    %738 = arith.subf %703, %714 : vector<16x8xf32>
    %739 = arith.subf %738, %737 : vector<16x8xf32>
    %740 = arith.mulf %739, %739 : vector<16x8xf32>
    %741 = arith.addf %652, %740 : vector<16x8xf32>
    %c8_i32_298 = arith.constant 8 : i32
    %cst_299 = arith.constant dense<0.000000e+00> : vector<8xf32>
    %742 = vector.multi_reduction <add>, %741, %cst_299 [0] : vector<16x8xf32> to vector<8xf32>
    %743 = vector.shape_cast %742 : vector<8xf32> to vector<1x8xf32>
    %744 = vector.shape_cast %743 : vector<1x8xf32> to vector<1x1x8xf32>
    %c0_300 = arith.constant 0 : index
    %c0_301 = arith.constant 0 : index
    %c0_302 = arith.constant 0 : index
    %745 = vector.load %arg5[%c0_300, %c0_301, %c0_302] : memref<1x1x8xf32, #tpu.memory_space<vmem>>, vector<1x1x8xf32>
    tpu.vector_store %arg5[%c0_300, %c0_301, %c0_302], %744 {strides = array<i32>} : memref<1x1x8xf32, #tpu.memory_space<vmem>>, vector<1x1x8xf32>,
    return
  }
  func.func @transform_0(%arg0: i32, %arg1: i32) -> (i32, i32, i32) {
    %c0_i32 = arith.constant 0 : i32
    %c0_i32_0 = arith.constant 0 : i32
    %c0_i32_1 = arith.constant 0 : i32
    return %c0_i32, %c0_i32_0, %arg0 : i32, i32, i32
  }
  func.func @transform_1(%arg0: i32, %arg1: i32) -> (i32, i32, i32) {
    %c0_i32 = arith.constant 0 : i32
    %c0_i32_0 = arith.constant 0 : i32
    %c0_i32_1 = arith.constant 0 : i32
    return %c0_i32, %c0_i32_0, %arg0 : i32, i32, i32
  }
  func.func @transform_2(%arg0: i32, %arg1: i32) -> (i32, i32, i32) {
    %c0_i32 = arith.constant 0 : i32
    %c0_i32_0 = arith.constant 0 : i32
    %c0_i32_1 = arith.constant 0 : i32
    return %c0_i32, %c0_i32_0, %arg0 : i32, i32, i32
  }
  func.func @transform_3(%arg0: i32, %arg1: i32) -> (i32, i32, i32) {
    %c0_i32 = arith.constant 0 : i32
    %c0_i32_0 = arith.constant 0 : i32
    return %arg1, %c0_i32, %arg0 : i32, i32, i32
  }
}

</mosaic_0001>

<llo_original>
// kernel: tpu_custom_call.1
$region0: #{tpu_custom_call.1}
  #allocation0 [shape = 'u32[]', space=smem, size = 0x4, offset = 0x4, fixed_abs, tag = 'smem constant byte address 0x4 - core index']
  #allocation1 [shape = 'u32[144,128]{1,0:T(1,128)}', space=vmem, size = 0x12000, scoped, tag = 'internal scratch']
  %s0 = inlined_call_operand.vmem [shape: f32[18,18,8], index: 0, kind: input, shape index: {}]
  %s1 = inlined_call_operand.vmem [shape: f32[18,18,8], index: 1, kind: input, shape index: {}]
  %s2 = inlined_call_operand.vmem [shape: f32[18,18,8], index: 2, kind: input, shape index: {}]
  %s3 = inlined_call_operand.hbm [shape: f32[2,1,8], index: 3, kind: output, shape index: {}]
  %s4 = sld [smem:[#allocation0]]
  $region45: #{tpu_custom_call.1} parent=0
    _
  %s6 = ssub.s32 1, %s4
  %s7 = scalar_select 0, %s6, %s4
  $region1: #{tpu_custom_call.1} parent=0
    #allocation2 [shape = 'u8[1024]{0}', space=vmem, size = 0x400, scoped, tag = 'output window, operand 0']
    #allocation3 [shape = 's32[2]{0}', space=sflag, size = 0x8, scoped, tag = 'scoped memory for tpu_custom_call.1']
    %8 = vsyncpa [#allocation3], 0
    %s9 = scalar_lea.sflag [#allocation3], 1
    %10 = vsyncpa %s9, 0
    loop: start=0, step=1, limit=4
    $region2: #{tpu_custom_call.1} parent=1 // loop_pre_header
      _
    $region3: #{tpu_custom_call.1} parent=1 // loop_header
      %s12 = sphi 0, %s16
      %p13 = scmp.ge.s32.totalorder %s12, 4
      %s19 = sphi 0, %s31
      %s20 = sphi 0, %s27
      %s21 = sphi 0, %s19
      %s22 = sphi 0, %s20
      %s23 = sphi 0, %s21
      %s24 = sphi 0, %s22
      %s34 = sphi 0, %s36
      %s37 = sphi 0, %s34
      %s38 = sphi 0, %s37
      %s54 = sphi 0, %s38
      %s60 = sphi 0, %s62
      %s63 = sphi 0, %s60
      %s64 = sphi 0, %s63
      %s80 = sphi 0, %s64
      %s86 = sphi 0, %s88
      %s89 = sphi 0, %s86
      %s90 = sphi 0, %s89
      %s106 = sphi 0, %s90
      %s114 = sphi 0, %s116
      %s117 = sphi 0, %s114
      %s118 = sphi 0, %s117
      %s134 = sphi 0, %s118
    $region4: #{tpu_custom_call.1} parent=1 // loop_header_branch
      %15 = sbr.rel (%p13) target = $region8
    $region5: #{tpu_custom_call.1} parent=1 // loop_body
      %s17 = ssub.s32 %s12, 1
      %s18 = ssub.s32 %s12, 2
      %s25 = sadd.s32 1, %s20
      %p26 = scmp.ge.s32.totalorder %s25, 2
      %s27 = scalar_select %p26, 0, %s25
      %s28 = sadd.s32 1, %s19
      %s29 = scalar_select %p26, %s28, %s19
      %p30 = scmp.ge.s32.totalorder %s29, 1
      %s31 = scalar_select %p30, 0, %s29
      %s32 = ssub.s32 %s19, %s31
      %p33 = scmp.eq.s32.totalorder %s32, 0
      %s35 = sadd.s32 %s34, 1
      %s36 = scalar_select %p33, %s34, %s35
      %p39 = pneg %p33
      %p40 = scmp.eq.s32.totalorder %s12, 1
      %p41 = por %p39, %p40
      %p42 = scmp.ne.s32.totalorder %s34, %s37
      %p43 = scmp.eq.s32.totalorder %s12, 0
      %p44 = por %p42, %p43
      %p45 = scmp.ne.s32.totalorder %s34, %s37
      %p46 = scmp.eq.s32.totalorder %s17, 1
      %p47 = por %p45, %p46
      %p48 = scmp.ne.s32.totalorder %s37, %s38
      %p49 = scmp.eq.s32.totalorder %s17, 0
      %p50 = por %p48, %p49
      %p51 = scmp.ne.s32.totalorder %s37, %s38
      %p52 = scmp.eq.s32.totalorder %s18, 1
      %p53 = por %p51, %p52
      %p55 = scmp.ne.s32.totalorder %s38, %s54
      %p56 = scmp.eq.s32.totalorder %s18, 0
      %p57 = por %p55, %p56
      %s58 = ssub.s32 %s19, %s31
      %p59 = scmp.eq.s32.totalorder %s58, 0
      %s61 = sadd.s32 %s60, 1
      %s62 = scalar_select %p59, %s60, %s61
      %p65 = pneg %p59
      %p66 = scmp.eq.s32.totalorder %s12, 1
      %p67 = por %p65, %p66
      %p68 = scmp.ne.s32.totalorder %s60, %s63
      %p69 = scmp.eq.s32.totalorder %s12, 0
      %p70 = por %p68, %p69
      %p71 = scmp.ne.s32.totalorder %s60, %s63
      %p72 = scmp.eq.s32.totalorder %s17, 1
      %p73 = por %p71, %p72
      %p74 = scmp.ne.s32.totalorder %s63, %s64
      %p75 = scmp.eq.s32.totalorder %s17, 0
      %p76 = por %p74, %p75
      %p77 = scmp.ne.s32.totalorder %s63, %s64
      %p78 = scmp.eq.s32.totalorder %s18, 1
      %p79 = por %p77, %p78
      %p81 = scmp.ne.s32.totalorder %s64, %s80
      %p82 = scmp.eq.s32.totalorder %s18, 0
      %p83 = por %p81, %p82
      %s84 = ssub.s32 %s19, %s31
      %p85 = scmp.eq.s32.totalorder %s84, 0
      %s87 = sadd.s32 %s86, 1
      %s88 = scalar_select %p85, %s86, %s87
      %p91 = pneg %p85
      %p92 = scmp.eq.s32.totalorder %s12, 1
      %p93 = por %p91, %p92
      %p94 = scmp.ne.s32.totalorder %s86, %s89
      %p95 = scmp.eq.s32.totalorder %s12, 0
      %p96 = por %p94, %p95
      %p97 = scmp.ne.s32.totalorder %s86, %s89
      %p98 = scmp.eq.s32.totalorder %s17, 1
      %p99 = por %p97, %p98
      %p100 = scmp.ne.s32.totalorder %s89, %s90
      %p101 = scmp.eq.s32.totalorder %s17, 0
      %p102 = por %p100, %p101
      %p103 = scmp.ne.s32.totalorder %s89, %s90
      %p104 = scmp.eq.s32.totalorder %s18, 1
      %p105 = por %p103, %p104
      %p107 = scmp.ne.s32.totalorder %s90, %s106
      %p108 = scmp.eq.s32.totalorder %s18, 0
      %p109 = por %p107, %p108
      %s110 = ssub.s32 %s20, %s27
      %s111 = ssub.s32 %s19, %s31
      %s112 = sor.u32 %s110, %s111
      %p113 = scmp.eq.s32.totalorder %s112, 0
      %s115 = sadd.s32 %s114, 1
      %s116 = scalar_select %p113, %s114, %s115
      %p119 = pneg %p113
      %p120 = scmp.eq.s32.totalorder %s12, 1
      %p121 = por %p119, %p120
      %p122 = scmp.ne.s32.totalorder %s114, %s117
      %p123 = scmp.eq.s32.totalorder %s12, 0
      %p124 = por %p122, %p123
      %p125 = scmp.ne.s32.totalorder %s114, %s117
      %p126 = scmp.eq.s32.totalorder %s17, 1
      %p127 = por %p125, %p126
      %p128 = scmp.ne.s32.totalorder %s117, %s118
      %p129 = scmp.eq.s32.totalorder %s17, 0
      %p130 = por %p128, %p129
      %p131 = scmp.ne.s32.totalorder %s117, %s118
      %p132 = scmp.eq.s32.totalorder %s18, 1
      %p133 = por %p131, %p132
      %p135 = scmp.ne.s32.totalorder %s118, %s134
      %p136 = scmp.eq.s32.totalorder %s18, 0
      %p137 = por %p135, %p136
      %p138 = scmp.le.s32.totalorder 1, %s12
      %p139 = scmp.lt.s32.totalorder %s12, 3
      %p140 = pnand %p138, %p139
      %p141 = pneg %p140
      // Predicated region
      $region9: #{tpu_custom_call.1} parent=5 // pred_check
        _
      $region10: #{tpu_custom_call.1} parent=5 // pred_check_branch
        %143 = sbr.rel (%p140) target = $region12
      $region11: #{tpu_custom_call.1} parent=5 // pred_region
        %s144 = ssub.s32 %s12, 1
        // Predicated region
        $region13: #{tpu_custom_call.1} parent=11 // pred_check
          %p145 = pneg %p50
        $region14: #{tpu_custom_call.1} parent=11 // pred_check_branch
          %147 = sbr.rel (%p145) target = $region16
        $region15: #{tpu_custom_call.1} parent=11 // pred_region
          %p148 = scmp.lt.s32.totalorder %s21, 0
          %s149 = scalar_select %p148, %s21, 0
          %s150 = smul.addr %s149, 8
          %s151 = scalar_lea.vmem %s0, %s150
        $region16: #{tpu_custom_call.1} parent=11 // pred_fallthru
          _
        // Predicated region
        $region17: #{tpu_custom_call.1} parent=11 // pred_check
          %p152 = pneg %p76
        $region18: #{tpu_custom_call.1} parent=11 // pred_check_branch
          %154 = sbr.rel (%p152) target = $region20
        $region19: #{tpu_custom_call.1} parent=11 // pred_region
          %p155 = scmp.lt.s32.totalorder %s21, 0
          %s156 = scalar_select %p155, %s21, 0
          %s157 = smul.addr %s156, 8
          %s158 = scalar_lea.vmem %s1, %s157
        $region20: #{tpu_custom_call.1} parent=11 // pred_fallthru
          _
        // Predicated region
        $region21: #{tpu_custom_call.1} parent=11 // pred_check
          %p159 = pneg %p102
        $region22: #{tpu_custom_call.1} parent=11 // pred_check_branch
          %161 = sbr.rel (%p159) target = $region24
        $region23: #{tpu_custom_call.1} parent=11 // pred_region
          %p162 = scmp.lt.s32.totalorder %s21, 0
          %s163 = scalar_select %p162, %s21, 0
          %s164 = smul.addr %s163, 8
          %s165 = scalar_lea.vmem %s2, %s164
        $region24: #{tpu_custom_call.1} parent=11 // pred_fallthru
          _
      $region12: #{tpu_custom_call.1} parent=5 // pred_fallthru
        _
      %p166 = scmp.lt.s32.totalorder %s12, 2
      // Predicated region
      $region25: #{tpu_custom_call.1} parent=5 // pred_check
        %p167 = pneg %p166
      $region26: #{tpu_custom_call.1} parent=5 // pred_check_branch
        %169 = sbr.rel (%p167) target = $region28
      $region27: #{tpu_custom_call.1} parent=5 // pred_region
        _
      $region28: #{tpu_custom_call.1} parent=5 // pred_fallthru
        _
      %p170 = scmp.le.s32.totalorder 1, %s12
      %p171 = scmp.lt.s32.totalorder %s12, 3
      %p172 = pnand %p170, %p171
      %p173 = pneg %p172
      // Predicated region
      $region29: #{tpu_custom_call.1} parent=5 // pred_check
        _
      $region30: #{tpu_custom_call.1} parent=5 // pred_check_branch
        %175 = sbr.rel (%p172) target = $region32
      $region31: #{tpu_custom_call.1} parent=5 // pred_region
        %s176 = ssub.s32 %s12, 1
        %p177 = scmp.lt.s32.totalorder %s21, 0
        %s178 = scalar_select %p177, %s21, 0
        %s179 = smul.addr %s178, 8
        %s180 = scalar_lea.vmem %s0, %s179
        %p181 = pneg %p50
        %p182 = pneg %p47
        %p183 = scmp.lt.s32.totalorder %s21, 0
        %s184 = scalar_select %p183, %s21, 0
        %s185 = smul.addr %s184, 8
        %s186 = scalar_lea.vmem %s1, %s185
        %p187 = pneg %p76
        %p188 = pneg %p73
        %p189 = scmp.lt.s32.totalorder %s21, 0
        %s190 = scalar_select %p189, %s21, 0
        %s191 = smul.addr %s190, 8
        %s192 = scalar_lea.vmem %s2, %s191
        %p193 = pneg %p102
        %p194 = pneg %p99
        %p195 = pneg %p130
        %p196 = pneg %p127
        %s197 = sand.u32 %s117, 1
        %s198 = scalar_lea.sflag [#allocation3], %s197
        %s199 = sand.u32 %s117, 1
        %s200 = scalar_lea.vmem [#allocation2], %s199
        %p201 = scmp.lt.s32.totalorder %s21, 0
        %s202 = scalar_select %p201, %s21, 0
        %s203 = smul.addr %s202, 8
        %s204 = scalar_lea.vmem %s0, %s203
        %p205 = scmp.lt.s32.totalorder %s21, 0
        %s206 = scalar_select %p205, %s21, 0
        %s207 = smul.addr %s206, 8
        %s208 = scalar_lea.vmem %s1, %s207
        %p209 = scmp.lt.s32.totalorder %s21, 0
        %s210 = scalar_select %p209, %s21, 0
        %s211 = smul.addr %s210, 8
        %s212 = scalar_lea.vmem %s2, %s211
        %s213 = smul.u32 %s22, 8
        %s214 = smul.u32 %s213, 24
        %s215 = scalar_lea.vmem %s204, %s214
        %v216 = vld [vmem:[%s215 + $0x1] sm:$0xff]
        %v217 = vld [vmem:[%s215 + $0x9] sm:$0xff]
        %s218 = sadd.s32 %s213, 1
        %s219 = smul.u32 %s218, 24
        %s220 = scalar_lea.vmem %s204, %s219
        %v221 = vld [vmem:[%s220 + $0x1] sm:$0xff]
        %v222 = vld [vmem:[%s220 + $0x9] sm:$0xff]
        %s223 = scalar_lea.vmem %s208, %s214
        %v224 = vld [vmem:[%s223 + $0x1] sm:$0xff]
        %v225 = vld [vmem:[%s223 + $0x9] sm:$0xff]
        %s226 = scalar_lea.vmem %s208, %s219
        %v227 = vld [vmem:[%s226 + $0x1] sm:$0xff]
        %v228 = vld [vmem:[%s226 + $0x9] sm:$0xff]
        %s229 = scalar_lea.vmem %s212, %s214
        %v230 = vld [vmem:[%s229 + $0x1] sm:$0xff]
        %v231 = vld [vmem:[%s229 + $0x9] sm:$0xff]
        %v232 = vsub.f32 %v227, %v224
        %v233 = vsub.f32 %v228, %v225
        %v234 = vadd.f32 %v216, %v221
        %v235 = vadd.f32 %v217, %v222
        %v236 = vmul.f32 %v232, %v234
        %v237 = vmul.f32 %v233, %v235
        %v238 = vmul.f32 %v230, %v236
        %v239 = vmul.f32 %v231, %v237
        %v240 = vadd.f32 %v224, %v227
        %v241 = vadd.f32 %v225, %v228
        %v242 = vrcp.pop %v240
        %v243 = vrcp.pop %v241
        %v244 = vmul.f32 %v240, %v242
        %v245 = vmul.f32 %v241, %v243
        %v246 = vsub.f32 2.0, %v244
        %v247 = vsub.f32 2.0, %v245
        %v248 = vmul.f32 %v242, %v246
        %v249 = vmul.f32 %v243, %v247
        %v250 = vmul.f32 %v238, %v248
        %v251 = vmul.f32 %v239, %v249
        %s252 = sadd.s32 %s213, 2
        %s253 = smul.u32 %s252, 24
        %s254 = scalar_lea.vmem %s204, %s253
        %v255 = vld [vmem:[%s254 + $0x1] sm:$0xff]
        %v256 = vld [vmem:[%s254 + $0x9] sm:$0xff]
        %v257 = vld [vmem:[%s220] sm:$0xff]
        %v258 = vld [vmem:[%s220 + $0x8] sm:$0xff]
        %v259 = vld [vmem:[%s220 + $0x2] sm:$0xff]
        %v260 = vld [vmem:[%s220 + $0xa] sm:$0xff]
        %s261 = scalar_lea.vmem %s208, %s253
        %v262 = vld [vmem:[%s261 + $0x1] sm:$0xff]
        %v263 = vld [vmem:[%s261 + $0x9] sm:$0xff]
        %v264 = vld [vmem:[%s226] sm:$0xff]
        %v265 = vld [vmem:[%s226 + $0x8] sm:$0xff]
        %v266 = vld [vmem:[%s226 + $0x2] sm:$0xff]
        %v267 = vld [vmem:[%s226 + $0xa] sm:$0xff]
        %s268 = scalar_lea.vmem %s212, %s219
        %v269 = vld [vmem:[%s268 + $0x1] sm:$0xff]
        %v270 = vld [vmem:[%s268 + $0x9] sm:$0xff]
        %v271 = vld [vmem:[%s268] sm:$0xff]
        %v272 = vld [vmem:[%s268 + $0x8] sm:$0xff]
        %v273 = vadd.f32 %v221, %v255
        %v274 = vadd.f32 %v222, %v256
        %v275 = vadd.f32 %v216, %v273
        %v276 = vadd.f32 %v217, %v274
        %v277 = vmul.f32 %v221, 5.0
        %v278 = vmul.f32 %v222, 5.0
        %v279 = vsub.f32 %v275, %v277
        %v280 = vsub.f32 %v276, %v278
        %v281 = vadd.f32 %v279, %v257
        %v282 = vadd.f32 %v280, %v258
        %v283 = vadd.f32 %v281, %v259
        %v284 = vadd.f32 %v282, %v260
        %v285 = vsub.f32 %v262, %v227
        %v286 = vsub.f32 %v263, %v228
        %v287 = vmul.f32 %v285, %v273
        %v288 = vmul.f32 %v286, %v274
        %v289 = vmul.f32 %v269, %v287
        %v290 = vmul.f32 %v270, %v288
        %v291 = vadd.f32 %v227, %v262
        %v292 = vadd.f32 %v228, %v263
        %v293 = vrcp.pop %v291
        %v294 = vrcp.pop %v292
        %v295 = vmul.f32 %v291, %v293
        %v296 = vmul.f32 %v292, %v294
        %v297 = vsub.f32 2.0, %v295
        %v298 = vsub.f32 2.0, %v296
        %v299 = vmul.f32 %v293, %v297
        %v300 = vmul.f32 %v294, %v298
        %v301 = vmul.f32 %v289, %v299
        %v302 = vmul.f32 %v290, %v300
        %v303 = vsub.f32 %v301, %v250
        %v304 = vsub.f32 %v302, %v251
        %v305 = vsub.f32 %v266, %v227
        %v306 = vsub.f32 %v267, %v228
        %v307 = vadd.f32 %v221, %v259
        %v308 = vadd.f32 %v222, %v260
        %v309 = vmul.f32 %v305, %v307
        %v310 = vmul.f32 %v306, %v308
        %v311 = vmul.f32 %v269, %v309
        %v312 = vmul.f32 %v270, %v310
        %v313 = vadd.f32 %v227, %v266
        %v314 = vadd.f32 %v228, %v267
        %v315 = vrcp.pop %v313
        %v316 = vrcp.pop %v314
        %v317 = vmul.f32 %v313, %v315
        %v318 = vmul.f32 %v314, %v316
        %v319 = vsub.f32 2.0, %v317
        %v320 = vsub.f32 2.0, %v318
        %v321 = vmul.f32 %v315, %v319
        %v322 = vmul.f32 %v316, %v320
        %v323 = vmul.f32 %v311, %v321
        %v324 = vmul.f32 %v312, %v322
        %v325 = vsub.f32 %v227, %v264
        %v326 = vsub.f32 %v228, %v265
        %v327 = vadd.f32 %v257, %v221
        %v328 = vadd.f32 %v258, %v222
        %v329 = vmul.f32 %v325, %v327
        %v330 = vmul.f32 %v326, %v328
        %v331 = vmul.f32 %v271, %v329
        %v332 = vmul.f32 %v272, %v330
        %v333 = vadd.f32 %v264, %v227
        %v334 = vadd.f32 %v265, %v228
        %v335 = vrcp.pop %v333
        %v336 = vrcp.pop %v334
        %v337 = vmul.f32 %v333, %v335
        %v338 = vmul.f32 %v334, %v336
        %v339 = vsub.f32 2.0, %v337
        %v340 = vsub.f32 2.0, %v338
        %v341 = vmul.f32 %v335, %v339
        %v342 = vmul.f32 %v336, %v340
        %v343 = vmul.f32 %v331, %v341
        %v344 = vmul.f32 %v332, %v342
        %v345 = vsub.f32 %v323, %v343
        %v346 = vsub.f32 %v324, %v344
        %v347 = vsub.f32 %v283, %v303
        %v348 = vsub.f32 %v284, %v304
        %v349 = vsub.f32 %v347, %v345
        %v350 = vsub.f32 %v348, %v346
        %v351 = vmul.f32 %v349, %v349
        %v352 = vmul.f32 %v350, %v350
        %v353 = vadd.f32 %v351, 0.0
        %v354 = vadd.f32 %v352, 0.0
        %s355 = sadd.s32 %s213, 3
        %s356 = smul.u32 %s355, 24
        %s357 = scalar_lea.vmem %s204, %s356
        %v358 = vld [vmem:[%s357 + $0x1] sm:$0xff]
        %v359 = vld [vmem:[%s357 + $0x9] sm:$0xff]
        %v360 = vld [vmem:[%s254] sm:$0xff]
        %v361 = vld [vmem:[%s254 + $0x8] sm:$0xff]
        %v362 = vld [vmem:[%s254 + $0x2] sm:$0xff]
        %v363 = vld [vmem:[%s254 + $0xa] sm:$0xff]
        %s364 = scalar_lea.vmem %s208, %s356
        %v365 = vld [vmem:[%s364 + $0x1] sm:$0xff]
        %v366 = vld [vmem:[%s364 + $0x9] sm:$0xff]
        %v367 = vld [vmem:[%s261] sm:$0xff]
        %v368 = vld [vmem:[%s261 + $0x8] sm:$0xff]
        %v369 = vld [vmem:[%s261 + $0x2] sm:$0xff]
        %v370 = vld [vmem:[%s261 + $0xa] sm:$0xff]
        %s371 = scalar_lea.vmem %s212, %s253
        %v372 = vld [vmem:[%s371 + $0x1] sm:$0xff]
        %v373 = vld [vmem:[%s371 + $0x9] sm:$0xff]
        %v374 = vld [vmem:[%s371] sm:$0xff]
        %v375 = vld [vmem:[%s371 + $0x8] sm:$0xff]
        %v376 = vadd.f32 %v255, %v358
        %v377 = vadd.f32 %v256, %v359
        %v378 = vadd.f32 %v221, %v376
        %v379 = vadd.f32 %v222, %v377
        %v380 = vmul.f32 %v255, 5.0
        %v381 = vmul.f32 %v256, 5.0
        %v382 = vsub.f32 %v378, %v380
        %v383 = vsub.f32 %v379, %v381
        %v384 = vadd.f32 %v382, %v360
        %v385 = vadd.f32 %v383, %v361
        %v386 = vadd.f32 %v384, %v362
        %v387 = vadd.f32 %v385, %v363
        %v388 = vsub.f32 %v365, %v262
        %v389 = vsub.f32 %v366, %v263
        %v390 = vmul.f32 %v388, %v376
        %v391 = vmul.f32 %v389, %v377
        %v392 = vmul.f32 %v372, %v390
        %v393 = vmul.f32 %v373, %v391
        %v394 = vadd.f32 %v262, %v365
        %v395 = vadd.f32 %v263, %v366
        %v396 = vrcp.pop %v394
        %v397 = vrcp.pop %v395
        %v398 = vmul.f32 %v394, %v396
        %v399 = vmul.f32 %v395, %v397
        %v400 = vsub.f32 2.0, %v398
        %v401 = vsub.f32 2.0, %v399
        %v402 = vmul.f32 %v396, %v400
        %v403 = vmul.f32 %v397, %v401
        %v404 = vmul.f32 %v392, %v402
        %v405 = vmul.f32 %v393, %v403
        %v406 = vsub.f32 %v404, %v301
        %v407 = vsub.f32 %v405, %v302
        %v408 = vsub.f32 %v369, %v262
        %v409 = vsub.f32 %v370, %v263
        %v410 = vadd.f32 %v255, %v362
        %v411 = vadd.f32 %v256, %v363
        %v412 = vmul.f32 %v408, %v410
        %v413 = vmul.f32 %v409, %v411
        %v414 = vmul.f32 %v372, %v412
        %v415 = vmul.f32 %v373, %v413
        %v416 = vadd.f32 %v262, %v369
        %v417 = vadd.f32 %v263, %v370
        %v418 = vrcp.pop %v416
        %v419 = vrcp.pop %v417
        %v420 = vmul.f32 %v416, %v418
        %v421 = vmul.f32 %v417, %v419
        %v422 = vsub.f32 2.0, %v420
        %v423 = vsub.f32 2.0, %v421
        %v424 = vmul.f32 %v418, %v422
        %v425 = vmul.f32 %v419, %v423
        %v426 = vmul.f32 %v414, %v424
        %v427 = vmul.f32 %v415, %v425
        %v428 = vsub.f32 %v262, %v367
        %v429 = vsub.f32 %v263, %v368
        %v430 = vadd.f32 %v360, %v255
        %v431 = vadd.f32 %v361, %v256
        %v432 = vmul.f32 %v428, %v430
        %v433 = vmul.f32 %v429, %v431
        %v434 = vmul.f32 %v374, %v432
        %v435 = vmul.f32 %v375, %v433
        %v436 = vadd.f32 %v367, %v262
        %v437 = vadd.f32 %v368, %v263
        %v438 = vrcp.pop %v436
        %v439 = vrcp.pop %v437
        %v440 = vmul.f32 %v436, %v438
        %v441 = vmul.f32 %v437, %v439
        %v442 = vsub.f32 2.0, %v440
        %v443 = vsub.f32 2.0, %v441
        %v444 = vmul.f32 %v438, %v442
        %v445 = vmul.f32 %v439, %v443
        %v446 = vmul.f32 %v434, %v444
        %v447 = vmul.f32 %v435, %v445
        %v448 = vsub.f32 %v426, %v446
        %v449 = vsub.f32 %v427, %v447
        %v450 = vsub.f32 %v386, %v406
        %v451 = vsub.f32 %v387, %v407
        %v452 = vsub.f32 %v450, %v448
        %v453 = vsub.f32 %v451, %v449
        %v454 = vmul.f32 %v452, %v452
        %v455 = vmul.f32 %v453, %v453
        %v456 = vadd.f32 %v353, %v454
        %v457 = vadd.f32 %v354, %v455
        %s458 = sadd.s32 %s213, 4
        %s459 = smul.u32 %s458, 24
        %s460 = scalar_lea.vmem %s204, %s459
        %v461 = vld [vmem:[%s460 + $0x1] sm:$0xff]
        %v462 = vld [vmem:[%s460 + $0x9] sm:$0xff]
        %v463 = vld [vmem:[%s357] sm:$0xff]
        %v464 = vld [vmem:[%s357 + $0x8] sm:$0xff]
        %v465 = vld [vmem:[%s357 + $0x2] sm:$0xff]
        %v466 = vld [vmem:[%s357 + $0xa] sm:$0xff]
        %s467 = scalar_lea.vmem %s208, %s459
        %v468 = vld [vmem:[%s467 + $0x1] sm:$0xff]
        %v469 = vld [vmem:[%s467 + $0x9] sm:$0xff]
        %v470 = vld [vmem:[%s364] sm:$0xff]
        %v471 = vld [vmem:[%s364 + $0x8] sm:$0xff]
        %v472 = vld [vmem:[%s364 + $0x2] sm:$0xff]
        %v473 = vld [vmem:[%s364 + $0xa] sm:$0xff]
        %s474 = scalar_lea.vmem %s212, %s356
        %v475 = vld [vmem:[%s474 + $0x1] sm:$0xff]
        %v476 = vld [vmem:[%s474 + $0x9] sm:$0xff]
        %v477 = vld [vmem:[%s474] sm:$0xff]
        %v478 = vld [vmem:[%s474 + $0x8] sm:$0xff]
        %v479 = vadd.f32 %v358, %v461
        %v480 = vadd.f32 %v359, %v462
        %v481 = vadd.f32 %v255, %v479
        %v482 = vadd.f32 %v256, %v480
        %v483 = vmul.f32 %v358, 5.0
        %v484 = vmul.f32 %v359, 5.0
        %v485 = vsub.f32 %v481, %v483
        %v486 = vsub.f32 %v482, %v484
        %v487 = vadd.f32 %v485, %v463
        %v488 = vadd.f32 %v486, %v464
        %v489 = vadd.f32 %v487, %v465
        %v490 = vadd.f32 %v488, %v466
        %v491 = vsub.f32 %v468, %v365
        %v492 = vsub.f32 %v469, %v366
        %v493 = vmul.f32 %v491, %v479
        %v494 = vmul.f32 %v492, %v480
        %v495 = vmul.f32 %v475, %v493
        %v496 = vmul.f32 %v476, %v494
        %v497 = vadd.f32 %v365, %v468
        %v498 = vadd.f32 %v366, %v469
        %v499 = vrcp.pop %v497
        %v500 = vrcp.pop %v498
        %v501 = vmul.f32 %v497, %v499
        %v502 = vmul.f32 %v498, %v500
        %v503 = vsub.f32 2.0, %v501
        %v504 = vsub.f32 2.0, %v502
        %v505 = vmul.f32 %v499, %v503
        %v506 = vmul.f32 %v500, %v504
        %v507 = vmul.f32 %v495, %v505
        %v508 = vmul.f32 %v496, %v506
        %v509 = vsub.f32 %v507, %v404
        %v510 = vsub.f32 %v508, %v405
        %v511 = vsub.f32 %v472, %v365
        %v512 = vsub.f32 %v473, %v366
        %v513 = vadd.f32 %v358, %v465
        %v514 = vadd.f32 %v359, %v466
        %v515 = vmul.f32 %v511, %v513
        %v516 = vmul.f32 %v512, %v514
        %v517 = vmul.f32 %v475, %v515
        %v518 = vmul.f32 %v476, %v516
        %v519 = vadd.f32 %v365, %v472
        %v520 = vadd.f32 %v366, %v473
        %v521 = vrcp.pop %v519
        %v522 = vrcp.pop %v520
        %v523 = vmul.f32 %v519, %v521
        %v524 = vmul.f32 %v520, %v522
        %v525 = vsub.f32 2.0, %v523
        %v526 = vsub.f32 2.0, %v524
        %v527 = vmul.f32 %v521, %v525
        %v528 = vmul.f32 %v522, %v526
        %v529 = vmul.f32 %v517, %v527
        %v530 = vmul.f32 %v518, %v528
        %v531 = vsub.f32 %v365, %v470
        %v532 = vsub.f32 %v366, %v471
        %v533 = vadd.f32 %v463, %v358
        %v534 = vadd.f32 %v464, %v359
        %v535 = vmul.f32 %v531, %v533
        %v536 = vmul.f32 %v532, %v534
        %v537 = vmul.f32 %v477, %v535
        %v538 = vmul.f32 %v478, %v536
        %v539 = vadd.f32 %v470, %v365
        %v540 = vadd.f32 %v471, %v366
        %v541 = vrcp.pop %v539
        %v542 = vrcp.pop %v540
        %v543 = vmul.f32 %v539, %v541
        %v544 = vmul.f32 %v540, %v542
        %v545 = vsub.f32 2.0, %v543
        %v546 = vsub.f32 2.0, %v544
        %v547 = vmul.f32 %v541, %v545
        %v548 = vmul.f32 %v542, %v546
        %v549 = vmul.f32 %v537, %v547
        %v550 = vmul.f32 %v538, %v548
        %v551 = vsub.f32 %v529, %v549
        %v552 = vsub.f32 %v530, %v550
        %v553 = vsub.f32 %v489, %v509
        %v554 = vsub.f32 %v490, %v510
        %v555 = vsub.f32 %v553, %v551
        %v556 = vsub.f32 %v554, %v552
        %v557 = vmul.f32 %v555, %v555
        %v558 = vmul.f32 %v556, %v556
        %v559 = vadd.f32 %v456, %v557
        %v560 = vadd.f32 %v457, %v558
        %s561 = sadd.s32 %s213, 5
        %s562 = smul.u32 %s561, 24
        %s563 = scalar_lea.vmem %s204, %s562
        %v564 = vld [vmem:[%s563 + $0x1] sm:$0xff]
        %v565 = vld [vmem:[%s563 + $0x9] sm:$0xff]
        %v566 = vld [vmem:[%s460] sm:$0xff]
        %v567 = vld [vmem:[%s460 + $0x8] sm:$0xff]
        %v568 = vld [vmem:[%s460 + $0x2] sm:$0xff]
        %v569 = vld [vmem:[%s460 + $0xa] sm:$0xff]
        %s570 = scalar_lea.vmem %s208, %s562
        %v571 = vld [vmem:[%s570 + $0x1] sm:$0xff]
        %v572 = vld [vmem:[%s570 + $0x9] sm:$0xff]
        %v573 = vld [vmem:[%s467] sm:$0xff]
        %v574 = vld [vmem:[%s467 + $0x8] sm:$0xff]
        %v575 = vld [vmem:[%s467 + $0x2] sm:$0xff]
        %v576 = vld [vmem:[%s467 + $0xa] sm:$0xff]
        %s577 = scalar_lea.vmem %s212, %s459
        %v578 = vld [vmem:[%s577 + $0x1] sm:$0xff]
        %v579 = vld [vmem:[%s577 + $0x9] sm:$0xff]
        %v580 = vld [vmem:[%s577] sm:$0xff]
        %v581 = vld [vmem:[%s577 + $0x8] sm:$0xff]
        %v582 = vadd.f32 %v461, %v564
        %v583 = vadd.f32 %v462, %v565
        %v584 = vadd.f32 %v358, %v582
        %v585 = vadd.f32 %v359, %v583
        %v586 = vmul.f32 %v461, 5.0
        %v587 = vmul.f32 %v462, 5.0
        %v588 = vsub.f32 %v584, %v586
        %v589 = vsub.f32 %v585, %v587
        %v590 = vadd.f32 %v588, %v566
        %v591 = vadd.f32 %v589, %v567
        %v592 = vadd.f32 %v590, %v568
        %v593 = vadd.f32 %v591, %v569
        %v594 = vsub.f32 %v571, %v468
        %v595 = vsub.f32 %v572, %v469
        %v596 = vmul.f32 %v594, %v582
        %v597 = vmul.f32 %v595, %v583
        %v598 = vmul.f32 %v578, %v596
        %v599 = vmul.f32 %v579, %v597
        %v600 = vadd.f32 %v468, %v571
        %v601 = vadd.f32 %v469, %v572
        %v602 = vrcp.pop %v600
        %v603 = vrcp.pop %v601
        %v604 = vmul.f32 %v600, %v602
        %v605 = vmul.f32 %v601, %v603
        %v606 = vsub.f32 2.0, %v604
        %v607 = vsub.f32 2.0, %v605
        %v608 = vmul.f32 %v602, %v606
        %v609 = vmul.f32 %v603, %v607
        %v610 = vmul.f32 %v598, %v608
        %v611 = vmul.f32 %v599, %v609
        %v612 = vsub.f32 %v610, %v507
        %v613 = vsub.f32 %v611, %v508
        %v614 = vsub.f32 %v575, %v468
        %v615 = vsub.f32 %v576, %v469
        %v616 = vadd.f32 %v461, %v568
        %v617 = vadd.f32 %v462, %v569
        %v618 = vmul.f32 %v614, %v616
        %v619 = vmul.f32 %v615, %v617
        %v620 = vmul.f32 %v578, %v618
        %v621 = vmul.f32 %v579, %v619
        %v622 = vadd.f32 %v468, %v575
        %v623 = vadd.f32 %v469, %v576
        %v624 = vrcp.pop %v622
        %v625 = vrcp.pop %v623
        %v626 = vmul.f32 %v622, %v624
        %v627 = vmul.f32 %v623, %v625
        %v628 = vsub.f32 2.0, %v626
        %v629 = vsub.f32 2.0, %v627
        %v630 = vmul.f32 %v624, %v628
        %v631 = vmul.f32 %v625, %v629
        %v632 = vmul.f32 %v620, %v630
        %v633 = vmul.f32 %v621, %v631
        %v634 = vsub.f32 %v468, %v573
        %v635 = vsub.f32 %v469, %v574
        %v636 = vadd.f32 %v566, %v461
        %v637 = vadd.f32 %v567, %v462
        %v638 = vmul.f32 %v634, %v636
        %v639 = vmul.f32 %v635, %v637
        %v640 = vmul.f32 %v580, %v638
        %v641 = vmul.f32 %v581, %v639
        %v642 = vadd.f32 %v573, %v468
        %v643 = vadd.f32 %v574, %v469
        %v644 = vrcp.pop %v642
        %v645 = vrcp.pop %v643
        %v646 = vmul.f32 %v642, %v644
        %v647 = vmul.f32 %v643, %v645
        %v648 = vsub.f32 2.0, %v646
        %v649 = vsub.f32 2.0, %v647
        %v650 = vmul.f32 %v644, %v648
        %v651 = vmul.f32 %v645, %v649
        %v652 = vmul.f32 %v640, %v650
        %v653 = vmul.f32 %v641, %v651
        %v654 = vsub.f32 %v632, %v652
        %v655 = vsub.f32 %v633, %v653
        %v656 = vsub.f32 %v592, %v612
        %v657 = vsub.f32 %v593, %v613
        %v658 = vsub.f32 %v656, %v654
        %v659 = vsub.f32 %v657, %v655
        %v660 = vmul.f32 %v658, %v658
        %v661 = vmul.f32 %v659, %v659
        %v662 = vadd.f32 %v559, %v660
        %v663 = vadd.f32 %v560, %v661
        %s664 = sadd.s32 %s213, 6
        %s665 = smul.u32 %s664, 24
        %s666 = scalar_lea.vmem %s204, %s665
        %v667 = vld [vmem:[%s666 + $0x1] sm:$0xff]
        %v668 = vld [vmem:[%s666 + $0x9] sm:$0xff]
        %v669 = vld [vmem:[%s563] sm:$0xff]
        %v670 = vld [vmem:[%s563 + $0x8] sm:$0xff]
        %v671 = vld [vmem:[%s563 + $0x2] sm:$0xff]
        %v672 = vld [vmem:[%s563 + $0xa] sm:$0xff]
        %s673 = scalar_lea.vmem %s208, %s665
        %v674 = vld [vmem:[%s673 + $0x1] sm:$0xff]
        %v675 = vld [vmem:[%s673 + $0x9] sm:$0xff]
        %v676 = vld [vmem:[%s570] sm:$0xff]
        %v677 = vld [vmem:[%s570 + $0x8] sm:$0xff]
        %v678 = vld [vmem:[%s570 + $0x2] sm:$0xff]
        %v679 = vld [vmem:[%s570 + $0xa] sm:$0xff]
        %s680 = scalar_lea.vmem %s212, %s562
        %v681 = vld [vmem:[%s680 + $0x1] sm:$0xff]
        %v682 = vld [vmem:[%s680 + $0x9] sm:$0xff]
        %v683 = vld [vmem:[%s680] sm:$0xff]
        %v684 = vld [vmem:[%s680 + $0x8] sm:$0xff]
        %v685 = vadd.f32 %v564, %v667
        %v686 = vadd.f32 %v565, %v668
        %v687 = vadd.f32 %v461, %v685
        %v688 = vadd.f32 %v462, %v686
        %v689 = vmul.f32 %v564, 5.0
        %v690 = vmul.f32 %v565, 5.0
        %v691 = vsub.f32 %v687, %v689
        %v692 = vsub.f32 %v688, %v690
        %v693 = vadd.f32 %v691, %v669
        %v694 = vadd.f32 %v692, %v670
        %v695 = vadd.f32 %v693, %v671
        %v696 = vadd.f32 %v694, %v672
        %v697 = vsub.f32 %v674, %v571
        %v698 = vsub.f32 %v675, %v572
        %v699 = vmul.f32 %v697, %v685
        %v700 = vmul.f32 %v698, %v686
        %v701 = vmul.f32 %v681, %v699
        %v702 = vmul.f32 %v682, %v700
        %v703 = vadd.f32 %v571, %v674
        %v704 = vadd.f32 %v572, %v675
        %v705 = vrcp.pop %v703
        %v706 = vrcp.pop %v704
        %v707 = vmul.f32 %v703, %v705
        %v708 = vmul.f32 %v704, %v706
        %v709 = vsub.f32 2.0, %v707
        %v710 = vsub.f32 2.0, %v708
        %v711 = vmul.f32 %v705, %v709
        %v712 = vmul.f32 %v706, %v710
        %v713 = vmul.f32 %v701, %v711
        %v714 = vmul.f32 %v702, %v712
        %v715 = vsub.f32 %v713, %v610
        %v716 = vsub.f32 %v714, %v611
        %v717 = vsub.f32 %v678, %v571
        %v718 = vsub.f32 %v679, %v572
        %v719 = vadd.f32 %v564, %v671
        %v720 = vadd.f32 %v565, %v672
        %v721 = vmul.f32 %v717, %v719
        %v722 = vmul.f32 %v718, %v720
        %v723 = vmul.f32 %v681, %v721
        %v724 = vmul.f32 %v682, %v722
        %v725 = vadd.f32 %v571, %v678
        %v726 = vadd.f32 %v572, %v679
        %v727 = vrcp.pop %v725
        %v728 = vrcp.pop %v726
        %v729 = vmul.f32 %v725, %v727
        %v730 = vmul.f32 %v726, %v728
        %v731 = vsub.f32 2.0, %v729
        %v732 = vsub.f32 2.0, %v730
        %v733 = vmul.f32 %v727, %v731
        %v734 = vmul.f32 %v728, %v732
        %v735 = vmul.f32 %v723, %v733
        %v736 = vmul.f32 %v724, %v734
        %v737 = vsub.f32 %v571, %v676
        %v738 = vsub.f32 %v572, %v677
        %v739 = vadd.f32 %v669, %v564
        %v740 = vadd.f32 %v670, %v565
        %v741 = vmul.f32 %v737, %v739
        %v742 = vmul.f32 %v738, %v740
        %v743 = vmul.f32 %v683, %v741
        %v744 = vmul.f32 %v684, %v742
        %v745 = vadd.f32 %v676, %v571
        %v746 = vadd.f32 %v677, %v572
        %v747 = vrcp.pop %v745
        %v748 = vrcp.pop %v746
        %v749 = vmul.f32 %v745, %v747
        %v750 = vmul.f32 %v746, %v748
        %v751 = vsub.f32 2.0, %v749
        %v752 = vsub.f32 2.0, %v750
        %v753 = vmul.f32 %v747, %v751
        %v754 = vmul.f32 %v748, %v752
        %v755 = vmul.f32 %v743, %v753
        %v756 = vmul.f32 %v744, %v754
        %v757 = vsub.f32 %v735, %v755
        %v758 = vsub.f32 %v736, %v756
        %v759 = vsub.f32 %v695, %v715
        %v760 = vsub.f32 %v696, %v716
        %v761 = vsub.f32 %v759, %v757
        %v762 = vsub.f32 %v760, %v758
        %v763 = vmul.f32 %v761, %v761
        %v764 = vmul.f32 %v762, %v762
        %v765 = vadd.f32 %v662, %v763
        %v766 = vadd.f32 %v663, %v764
        %s767 = sadd.s32 %s213, 7
        %s768 = smul.u32 %s767, 24
        %s769 = scalar_lea.vmem %s204, %s768
        %v770 = vld [vmem:[%s769 + $0x1] sm:$0xff]
        %v771 = vld [vmem:[%s769 + $0x9] sm:$0xff]
        %v772 = vld [vmem:[%s666] sm:$0xff]
        %v773 = vld [vmem:[%s666 + $0x8] sm:$0xff]
        %v774 = vld [vmem:[%s666 + $0x2] sm:$0xff]
        %v775 = vld [vmem:[%s666 + $0xa] sm:$0xff]
        %s776 = scalar_lea.vmem %s208, %s768
        %v777 = vld [vmem:[%s776 + $0x1] sm:$0xff]
        %v778 = vld [vmem:[%s776 + $0x9] sm:$0xff]
        %v779 = vld [vmem:[%s673] sm:$0xff]
        %v780 = vld [vmem:[%s673 + $0x8] sm:$0xff]
        %v781 = vld [vmem:[%s673 + $0x2] sm:$0xff]
        %v782 = vld [vmem:[%s673 + $0xa] sm:$0xff]
        %s783 = scalar_lea.vmem %s212, %s665
        %v784 = vld [vmem:[%s783 + $0x1] sm:$0xff]
        %v785 = vld [vmem:[%s783 + $0x9] sm:$0xff]
        %v786 = vld [vmem:[%s783] sm:$0xff]
        %v787 = vld [vmem:[%s783 + $0x8] sm:$0xff]
        %v788 = vadd.f32 %v667, %v770
        %v789 = vadd.f32 %v668, %v771
        %v790 = vadd.f32 %v564, %v788
        %v791 = vadd.f32 %v565, %v789
        %v792 = vmul.f32 %v667, 5.0
        %v793 = vmul.f32 %v668, 5.0
        %v794 = vsub.f32 %v790, %v792
        %v795 = vsub.f32 %v791, %v793
        %v796 = vadd.f32 %v794, %v772
        %v797 = vadd.f32 %v795, %v773
        %v798 = vadd.f32 %v796, %v774
        %v799 = vadd.f32 %v797, %v775
        %v800 = vsub.f32 %v777, %v674
        %v801 = vsub.f32 %v778, %v675
        %v802 = vmul.f32 %v800, %v788
        %v803 = vmul.f32 %v801, %v789
        %v804 = vmul.f32 %v784, %v802
        %v805 = vmul.f32 %v785, %v803
        %v806 = vadd.f32 %v674, %v777
        %v807 = vadd.f32 %v675, %v778
        %v808 = vrcp.pop %v806
        %v809 = vrcp.pop %v807
        %v810 = vmul.f32 %v806, %v808
        %v811 = vmul.f32 %v807, %v809
        %v812 = vsub.f32 2.0, %v810
        %v813 = vsub.f32 2.0, %v811
        %v814 = vmul.f32 %v808, %v812
        %v815 = vmul.f32 %v809, %v813
        %v816 = vmul.f32 %v804, %v814
        %v817 = vmul.f32 %v805, %v815
        %v818 = vsub.f32 %v816, %v713
        %v819 = vsub.f32 %v817, %v714
        %v820 = vsub.f32 %v781, %v674
        %v821 = vsub.f32 %v782, %v675
        %v822 = vadd.f32 %v667, %v774
        %v823 = vadd.f32 %v668, %v775
        %v824 = vmul.f32 %v820, %v822
        %v825 = vmul.f32 %v821, %v823
        %v826 = vmul.f32 %v784, %v824
        %v827 = vmul.f32 %v785, %v825
        %v828 = vadd.f32 %v674, %v781
        %v829 = vadd.f32 %v675, %v782
        %v830 = vrcp.pop %v828
        %v831 = vrcp.pop %v829
        %v832 = vmul.f32 %v828, %v830
        %v833 = vmul.f32 %v829, %v831
        %v834 = vsub.f32 2.0, %v832
        %v835 = vsub.f32 2.0, %v833
        %v836 = vmul.f32 %v830, %v834
        %v837 = vmul.f32 %v831, %v835
        %v838 = vmul.f32 %v826, %v836
        %v839 = vmul.f32 %v827, %v837
        %v840 = vsub.f32 %v674, %v779
        %v841 = vsub.f32 %v675, %v780
        %v842 = vadd.f32 %v772, %v667
        %v843 = vadd.f32 %v773, %v668
        %v844 = vmul.f32 %v840, %v842
        %v845 = vmul.f32 %v841, %v843
        %v846 = vmul.f32 %v786, %v844
        %v847 = vmul.f32 %v787, %v845
        %v848 = vadd.f32 %v779, %v674
        %v849 = vadd.f32 %v780, %v675
        %v850 = vrcp.pop %v848
        %v851 = vrcp.pop %v849
        %v852 = vmul.f32 %v848, %v850
        %v853 = vmul.f32 %v849, %v851
        %v854 = vsub.f32 2.0, %v852
        %v855 = vsub.f32 2.0, %v853
        %v856 = vmul.f32 %v850, %v854
        %v857 = vmul.f32 %v851, %v855
        %v858 = vmul.f32 %v846, %v856
        %v859 = vmul.f32 %v847, %v857
        %v860 = vsub.f32 %v838, %v858
        %v861 = vsub.f32 %v839, %v859
        %v862 = vsub.f32 %v798, %v818
        %v863 = vsub.f32 %v799, %v819
        %v864 = vsub.f32 %v862, %v860
        %v865 = vsub.f32 %v863, %v861
        %v866 = vmul.f32 %v864, %v864
        %v867 = vmul.f32 %v865, %v865
        %v868 = vadd.f32 %v765, %v866
        %v869 = vadd.f32 %v766, %v867
        %s870 = sadd.s32 %s213, 8
        %s871 = smul.u32 %s870, 24
        %s872 = scalar_lea.vmem %s204, %s871
        %v873 = vld [vmem:[%s872 + $0x1] sm:$0xff]
        %v874 = vld [vmem:[%s872 + $0x9] sm:$0xff]
        %v875 = vld [vmem:[%s769] sm:$0xff]
        %v876 = vld [vmem:[%s769 + $0x8] sm:$0xff]
        %v877 = vld [vmem:[%s769 + $0x2] sm:$0xff]
        %v878 = vld [vmem:[%s769 + $0xa] sm:$0xff]
        %s879 = scalar_lea.vmem %s208, %s871
        %v880 = vld [vmem:[%s879 + $0x1] sm:$0xff]
        %v881 = vld [vmem:[%s879 + $0x9] sm:$0xff]
        %v882 = vld [vmem:[%s776] sm:$0xff]
        %v883 = vld [vmem:[%s776 + $0x8] sm:$0xff]
        %v884 = vld [vmem:[%s776 + $0x2] sm:$0xff]
        %v885 = vld [vmem:[%s776 + $0xa] sm:$0xff]
        %s886 = scalar_lea.vmem %s212, %s768
        %v887 = vld [vmem:[%s886 + $0x1] sm:$0xff]
        %v888 = vld [vmem:[%s886 + $0x9] sm:$0xff]
        %v889 = vld [vmem:[%s886] sm:$0xff]
        %v890 = vld [vmem:[%s886 + $0x8] sm:$0xff]
        %v891 = vadd.f32 %v770, %v873
        %v892 = vadd.f32 %v771, %v874
        %v893 = vadd.f32 %v667, %v891
        %v894 = vadd.f32 %v668, %v892
        %v895 = vmul.f32 %v770, 5.0
        %v896 = vmul.f32 %v771, 5.0
        %v897 = vsub.f32 %v893, %v895
        %v898 = vsub.f32 %v894, %v896
        %v899 = vadd.f32 %v897, %v875
        %v900 = vadd.f32 %v898, %v876
        %v901 = vadd.f32 %v899, %v877
        %v902 = vadd.f32 %v900, %v878
        %v903 = vsub.f32 %v880, %v777
        %v904 = vsub.f32 %v881, %v778
        %v905 = vmul.f32 %v903, %v891
        %v906 = vmul.f32 %v904, %v892
        %v907 = vmul.f32 %v887, %v905
        %v908 = vmul.f32 %v888, %v906
        %v909 = vadd.f32 %v777, %v880
        %v910 = vadd.f32 %v778, %v881
        %v911 = vrcp.pop %v909
        %v912 = vrcp.pop %v910
        %v913 = vmul.f32 %v909, %v911
        %v914 = vmul.f32 %v910, %v912
        %v915 = vsub.f32 2.0, %v913
        %v916 = vsub.f32 2.0, %v914
        %v917 = vmul.f32 %v911, %v915
        %v918 = vmul.f32 %v912, %v916
        %v919 = vmul.f32 %v907, %v917
        %v920 = vmul.f32 %v908, %v918
        %v921 = vsub.f32 %v919, %v816
        %v922 = vsub.f32 %v920, %v817
        %v923 = vsub.f32 %v884, %v777
        %v924 = vsub.f32 %v885, %v778
        %v925 = vadd.f32 %v770, %v877
        %v926 = vadd.f32 %v771, %v878
        %v927 = vmul.f32 %v923, %v925
        %v928 = vmul.f32 %v924, %v926
        %v929 = vmul.f32 %v887, %v927
        %v930 = vmul.f32 %v888, %v928
        %v931 = vadd.f32 %v777, %v884
        %v932 = vadd.f32 %v778, %v885
        %v933 = vrcp.pop %v931
        %v934 = vrcp.pop %v932
        %v935 = vmul.f32 %v931, %v933
        %v936 = vmul.f32 %v932, %v934
        %v937 = vsub.f32 2.0, %v935
        %v938 = vsub.f32 2.0, %v936
        %v939 = vmul.f32 %v933, %v937
        %v940 = vmul.f32 %v934, %v938
        %v941 = vmul.f32 %v929, %v939
        %v942 = vmul.f32 %v930, %v940
        %v943 = vsub.f32 %v777, %v882
        %v944 = vsub.f32 %v778, %v883
        %v945 = vadd.f32 %v875, %v770
        %v946 = vadd.f32 %v876, %v771
        %v947 = vmul.f32 %v943, %v945
        %v948 = vmul.f32 %v944, %v946
        %v949 = vmul.f32 %v889, %v947
        %v950 = vmul.f32 %v890, %v948
        %v951 = vadd.f32 %v882, %v777
        %v952 = vadd.f32 %v883, %v778
        %v953 = vrcp.pop %v951
        %v954 = vrcp.pop %v952
        %v955 = vmul.f32 %v951, %v953
        %v956 = vmul.f32 %v952, %v954
        %v957 = vsub.f32 2.0, %v955
        %v958 = vsub.f32 2.0, %v956
        %v959 = vmul.f32 %v953, %v957
        %v960 = vmul.f32 %v954, %v958
        %v961 = vmul.f32 %v949, %v959
        %v962 = vmul.f32 %v950, %v960
        %v963 = vsub.f32 %v941, %v961
        %v964 = vsub.f32 %v942, %v962
        %v965 = vsub.f32 %v901, %v921
        %v966 = vsub.f32 %v902, %v922
        %v967 = vsub.f32 %v965, %v963
        %v968 = vsub.f32 %v966, %v964
        %v969 = vmul.f32 %v967, %v967
        %v970 = vmul.f32 %v968, %v968
        %v971 = vadd.f32 %v868, %v969
        %v972 = vadd.f32 %v869, %v970
        %s973 = sadd.s32 %s213, 9
        %s974 = smul.u32 %s973, 24
        %s975 = scalar_lea.vmem %s204, %s974
        %v976 = vld [vmem:[%s975 + $0x1] sm:$0xff]
        %v977 = vld [vmem:[%s975 + $0x9] sm:$0xff]
        %v978 = vld [vmem:[%s872] sm:$0xff]
        %v979 = vld [vmem:[%s872 + $0x8] sm:$0xff]
        %v980 = vld [vmem:[%s872 + $0x2] sm:$0xff]
        %v981 = vld [vmem:[%s872 + $0xa] sm:$0xff]
        %s982 = scalar_lea.vmem %s208, %s974
        %v983 = vld [vmem:[%s982 + $0x1] sm:$0xff]
        %v984 = vld [vmem:[%s982 + $0x9] sm:$0xff]
        %v985 = vld [vmem:[%s879] sm:$0xff]
        %v986 = vld [vmem:[%s879 + $0x8] sm:$0xff]
        %v987 = vld [vmem:[%s879 + $0x2] sm:$0xff]
        %v988 = vld [vmem:[%s879 + $0xa] sm:$0xff]
        %s989 = scalar_lea.vmem %s212, %s871
        %v990 = vld [vmem:[%s989 + $0x1] sm:$0xff]
        %v991 = vld [vmem:[%s989 + $0x9] sm:$0xff]
        %v992 = vld [vmem:[%s989] sm:$0xff]
        %v993 = vld [vmem:[%s989 + $0x8] sm:$0xff]
        %v994 = vadd.f32 %v873, %v976
        %v995 = vadd.f32 %v874, %v977
        %v996 = vadd.f32 %v770, %v994
        %v997 = vadd.f32 %v771, %v995
        %v998 = vmul.f32 %v873, 5.0
        %v999 = vmul.f32 %v874, 5.0
        %v1000 = vsub.f32 %v996, %v998
        %v1001 = vsub.f32 %v997, %v999
        %v1002 = vadd.f32 %v1000, %v978
        %v1003 = vadd.f32 %v1001, %v979
        %v1004 = vadd.f32 %v1002, %v980
        %v1005 = vadd.f32 %v1003, %v981
        %v1006 = vsub.f32 %v983, %v880
        %v1007 = vsub.f32 %v984, %v881
        %v1008 = vmul.f32 %v1006, %v994
        %v1009 = vmul.f32 %v1007, %v995
        %v1010 = vmul.f32 %v990, %v1008
        %v1011 = vmul.f32 %v991, %v1009
        %v1012 = vadd.f32 %v880, %v983
        %v1013 = vadd.f32 %v881, %v984
        %v1014 = vrcp.pop %v1012
        %v1015 = vrcp.pop %v1013
        %v1016 = vmul.f32 %v1012, %v1014
        %v1017 = vmul.f32 %v1013, %v1015
        %v1018 = vsub.f32 2.0, %v1016
        %v1019 = vsub.f32 2.0, %v1017
        %v1020 = vmul.f32 %v1014, %v1018
        %v1021 = vmul.f32 %v1015, %v1019
        %v1022 = vmul.f32 %v1010, %v1020
        %v1023 = vmul.f32 %v1011, %v1021
        %v1024 = vsub.f32 %v1022, %v919
        %v1025 = vsub.f32 %v1023, %v920
        %v1026 = vsub.f32 %v987, %v880
        %v1027 = vsub.f32 %v988, %v881
        %v1028 = vadd.f32 %v873, %v980
        %v1029 = vadd.f32 %v874, %v981
        %v1030 = vmul.f32 %v1026, %v1028
        %v1031 = vmul.f32 %v1027, %v1029
        %v1032 = vmul.f32 %v990, %v1030
        %v1033 = vmul.f32 %v991, %v1031
        %v1034 = vadd.f32 %v880, %v987
        %v1035 = vadd.f32 %v881, %v988
        %v1036 = vrcp.pop %v1034
        %v1037 = vrcp.pop %v1035
        %v1038 = vmul.f32 %v1034, %v1036
        %v1039 = vmul.f32 %v1035, %v1037
        %v1040 = vsub.f32 2.0, %v1038
        %v1041 = vsub.f32 2.0, %v1039
        %v1042 = vmul.f32 %v1036, %v1040
        %v1043 = vmul.f32 %v1037, %v1041
        %v1044 = vmul.f32 %v1032, %v1042
        %v1045 = vmul.f32 %v1033, %v1043
        %v1046 = vsub.f32 %v880, %v985
        %v1047 = vsub.f32 %v881, %v986
        %v1048 = vadd.f32 %v978, %v873
        %v1049 = vadd.f32 %v979, %v874
        %v1050 = vmul.f32 %v1046, %v1048
        %v1051 = vmul.f32 %v1047, %v1049
        %v1052 = vmul.f32 %v992, %v1050
        %v1053 = vmul.f32 %v993, %v1051
        %v1054 = vadd.f32 %v985, %v880
        %v1055 = vadd.f32 %v986, %v881
        %v1056 = vrcp.pop %v1054
        %v1057 = vrcp.pop %v1055
        %v1058 = vmul.f32 %v1054, %v1056
        %v1059 = vmul.f32 %v1055, %v1057
        %v1060 = vsub.f32 2.0, %v1058
        %v1061 = vsub.f32 2.0, %v1059
        %v1062 = vmul.f32 %v1056, %v1060
        %v1063 = vmul.f32 %v1057, %v1061
        %v1064 = vmul.f32 %v1052, %v1062
        %v1065 = vmul.f32 %v1053, %v1063
        %v1066 = vsub.f32 %v1044, %v1064
        %v1067 = vsub.f32 %v1045, %v1065
        %v1068 = vsub.f32 %v1004, %v1024
        %v1069 = vsub.f32 %v1005, %v1025
        %v1070 = vsub.f32 %v1068, %v1066
        %v1071 = vsub.f32 %v1069, %v1067
        %v1072 = vmul.f32 %v1070, %v1070
        %v1073 = vmul.f32 %v1071, %v1071
        %v1074 = vadd.f32 %v971, %v1072
        %v1075 = vadd.f32 %v972, %v1073
        %vm1076 = vcmask 64512
        %v1077 = vsel %vm1076, %v1074, 0.0
        %v1078 = vsel %vm1076, %v1075, 0.0
        %v1079 = vadd.f32 %v1077, %v1078
        %v1080 = vrot.slane %v1079, 4
        %v1081 = vadd.f32 %v1079, %v1080
        %v1082 = vrot.slane %v1081, 2
        %v1083 = vadd.f32 %v1081, %v1082
        %v1084 = vrot.slane %v1083, 1
        %v1085 = vadd.f32 %v1083, %v1084
        %vm1086 = vcmask 57344
        %1087 = vst.msk [vmem:[%s200] sm:$0x1] %vm1086, %v1085
        %s1088 = sand.u32 %s117, 1
        %s1089 = scalar_lea.sflag [#allocation3], %s1088
        %s1090 = sand.u32 %s117, 1
        %s1091 = scalar_lea.vmem [#allocation2], %s1090
        // Predicated region
        $region33: #{tpu_custom_call.1} parent=31 // pred_check
          %p1092 = pneg %p127
        $region34: #{tpu_custom_call.1} parent=31 // pred_check_branch
          %1094 = sbr.rel (%p1092) target = $region36
        $region35: #{tpu_custom_call.1} parent=31 // pred_region
          %s1096 = ssub.s32 16, 16
          %1097 = vsyncadd %s1089, %s1096
          %s1098 = sadd.s32 %s21, %s22
          %s1099 = smul.addr %s1098, 16
          %s1100 = scalar_lea.hbm %s3, %s1099
          %s1102 = sshll.u32 %s1091, 4
          %s1103 = int_to_ptr.vmem [resolvable:$true] %s1102
          %1105 = dma.vmem_to_hbm [thread:$0]  %s1103, 16, %s1100, %s1089
        $region36: #{tpu_custom_call.1} parent=31 // pred_fallthru
          _
      $region32: #{tpu_custom_call.1} parent=5 // pred_fallthru
        _
      %p1106 = scmp.le.s32.totalorder 2, %s12
      // Predicated region
      $region37: #{tpu_custom_call.1} parent=5 // pred_check
        %p1107 = pneg %p1106
      $region38: #{tpu_custom_call.1} parent=5 // pred_check_branch
        %1109 = sbr.rel (%p1107) target = $region40
      $region39: #{tpu_custom_call.1} parent=5 // pred_region
        %s1110 = ssub.s32 %s12, 2
        // Predicated region
        $region41: #{tpu_custom_call.1} parent=39 // pred_check
          %p1111 = pneg %p133
        $region42: #{tpu_custom_call.1} parent=39 // pred_check_branch
          %1113 = sbr.rel (%p1111) target = $region44
        $region43: #{tpu_custom_call.1} parent=39 // pred_region
          %s1114 = sand.u32 %s118, 1
          %s1115 = scalar_lea.sflag [#allocation3], %s1114
          %s1116 = sand.u32 %s118, 1
          %s1117 = scalar_lea.vmem [#allocation2], %s1116
          %1118 = dma.done %s1115, 16
        $region44: #{tpu_custom_call.1} parent=39 // pred_fallthru
          _
      $region40: #{tpu_custom_call.1} parent=5 // pred_fallthru
        _
    $region6: #{tpu_custom_call.1} parent=1 // loop_footer
      %s16 = sadd.s32 1, %s12
    $region7: #{tpu_custom_call.1} parent=1 // loop_footer_branch
      %11 = sbr.rel target = $region3
    $region8: #{tpu_custom_call.1} parent=1 // loop_exit
      _
    %1119 = vsyncpa [#allocation3], 1
    %s1120 = scalar_lea.sflag [#allocation3], 1
    %1121 = vsyncpa %s1120, 1

</llo_original>
